<compile_context>
chip_gen: v5e
topology: v5e:2x2
jax: 0.10.0
libtpu: 0.0.40
codegen_flags: <defaults>
</compile_context>

<pallas_src>
import functools
import warnings

import numpy as np
import jax
import jax.numpy as jnp
from jax.experimental import pallas as pl
from jax.experimental.pallas import tpu as pltpu

warnings.filterwarnings("ignore", message=".*donat.*")  # keep stderr clean

LC_AMPL = 0.5
LANE = 128


def _round_up(x, m):
  return (x + m - 1) // m * m


# ----------------------------- Pallas kernel --------------------------------

def _lif_seq_kernel(x_ref, p0_ref, q0_ref, r0_ref, w_ref, b_ref,
                    ps_ref, psig_ref, p_ref, q_ref, r_ref, s_ref, u_ref,
                    *, alpha, beta, gamma, mp, mq, thr,
                    ksize, c_out, wc_pad, pooling, tile_rows):
  """One LIF-conv timestep; grid = (batch_tiles, T), T innermost.

  Layouts (rows = (b, h), lanes = (w, channel), zero-padded to 128 lanes):
    x / P / Q : (tile_rows, wci_pad)
    R / S / U : (tile_rows, wc_pad)   conv over the full HxW grid; positions
                                      with h >= Ho or w >= Wo are don't-care.
    pooled    : same slab, valid at (h = pooling*hp, w = pooling*wp).

  P/Q/R state is carried in the (VMEM-resident, aliased) output blocks across
  the time axis; initialized from the *0 inputs at t == 0.
  """
  t = pl.program_id(1)

  @pl.when(t == 0)
  def _init():
    p_ref[...] = p0_ref[...]
    q_ref[...] = q0_ref[...]
    r_ref[...] = r0_ref[...]

  # ---- 1) LIF P/Q update (P_new uses the OLD Q, as in the source) ----------
  x = x_ref[0]
  q_old = q_ref[...]
  p_new = alpha * p_ref[...] + mp * q_old
  p_ref[...] = p_new
  q_ref[...] = beta * q_old + mq * x

  # ---- 2) conv2d(P_new) as ONE matmul against a block-Toeplitz weight ------
  # kh-shifted copies via XLU sublane rotation (wrap rows only pollute the
  # don't-care h >= Ho region).  kw is folded into the Toeplitz weight.
  parts = [p_new]
  for kh in range(1, ksize):
    parts.append(pltpu.roll(p_new, shift=tile_rows - kh, axis=0))
  slab = parts[0] if ksize == 1 else jnp.concatenate(parts, axis=1)
  conv = jnp.dot(slab.astype(w_ref.dtype), w_ref[...],
                 preferred_element_type=jnp.float32) + b_ref[...]

  # ---- 3) refractory / spike / R update ------------------------------------
  # Source:  P,R,Q = (aP+mQ, gR, bQ+mX);  U = conv(P) - R;  S = U>=thr;  R += S
  r_old = r_ref[...]
  u = conv - gamma * r_old
  s = (u >= thr).astype(jnp.float32)
  r_ref[...] = gamma * r_old + s

  # ---- 4) 2x2 / stride-2 max-pool from registers (pooling==2, padding==0) --
  # Horizontal partner is c_out lanes away, vertical partner is 1 row away;
  # spikes/sigmoid are derived from the pooled U (both are monotone in U).
  if pooling == 2:
    uh = jnp.maximum(u, pltpu.roll(u, shift=wc_pad - c_out, axis=1))
    up = jnp.maximum(uh, pltpu.roll(uh, shift=tile_rows - 1, axis=0))
  else:                      # pooling == 1: MaxPool2d(1,1,0) is the identity
    up = u
  ps_ref[0] = (up >= thr).astype(jnp.float32)       # == maxpool(S)
  psig_ref[0] = jax.nn.sigmoid(up)                  # == maxpool(sigmoid(U))

  # ---- 5) full-resolution S/U snapshots only at the last timestep ----------
  @pl.when(t == pl.num_programs(1) - 1)
  def _fin():
    s_ref[...] = s
    u_ref[...] = u


# --------------------------------- module -----------------------------------

class LIFConv2dLayerPallas:

  def __init__(self, key, inp_shape, kernel_size, out_channels,
               tau_syn, tau_mem, tau_ref, delta_t,
               pooling=1, padding=0, thr=1.0, dropout_p=0.5,
               output_neurons=10, weight_mult=1.0, conv_dtype=jnp.float32):
    assert padding == 0       # TODO(synk): only padding=0 (module default) implemented
    assert pooling in (1, 2)  # TODO(synk): fused pool supports k=s=2 (or identity)
    self.inp_shape = inp_shape
    self.kernel_size = kernel_size
    self.out_channels = out_channels
    self.output_neurons = output_neurons
    self.pooling = pooling
    self.thr = float(thr)
    self.dropout_p = float(dropout_p)
    self.weight_mult = float(weight_mult)
    # conv_dtype=jnp.bfloat16 is recommended on v6e/v7x (bf16-native MXU);
    # default f32 preserves the torch module's numerics exactly.
    self.conv_dtype = conv_dtype

    c_in, h, w = inp_shape
    self.c_in, self.h, self.w = c_in, h, w
    self.ho = h - kernel_size + 1
    self.wo = w - kernel_size + 1
    self.pool_pad = (pooling - 1) // 2        # == 0 for pooling in (1, 2)
    self.hp = (self.ho + 2 * self.pool_pad - pooling) // pooling + 1
    self.wp = (self.wo + 2 * self.pool_pad - pooling) // pooling + 1
    self.n_readout_in = out_channels * self.hp * self.wp

    # lane-packed widths (rows = (b,h); lanes = (w, channel), padded to 128)
    self.wci = w * c_in
    self.wc = w * out_channels
    self.wci_pad = _round_up(self.wci, LANE)
    self.wc_pad = _round_up(self.wc, LANE)

    # --- deterministic parameter init (mirrors the unquantized __init__) ---
    fan_in = kernel_size * kernel_size * c_in
    stdv = 1.0 / np.sqrt(fan_in)
    k_w, k_b, k_ro = jax.random.split(key, 3)
    self.weights = jax.random.uniform(
        k_w, (out_channels, c_in, kernel_size, kernel_size), jnp.float32,
        -stdv * weight_mult, stdv * weight_mult)                     # OIHW
    self.bias = jax.random.uniform(
        k_b, (out_channels,), jnp.float32,
        -stdv * weight_mult * 100.0, stdv * weight_mult * 100.0)
    ro_stdv = LC_AMPL / np.sqrt(self.n_readout_in)
    self.ro_weights = jax.random.uniform(
        k_ro, (output_neurons, self.n_readout_in), jnp.float32,
        -ro_stdv, ro_stdv)
    # (weight_fa of QLinearLayerSign is only used in backward -> not needed.)

    # Block-Toeplitz conv weight: (K * wci_pad, wc_pad).  Row (kh, w_in, c)
    # times column (w_out, c_out) carries weights[c_out, c, kh, w_in - w_out].
    w_np = np.asarray(self.weights)
    wm = np.zeros((kernel_size * self.wci_pad, self.wc_pad), np.float32)
    for kh in range(kernel_size):
      for kw in range(kernel_size):
        blk = np.ascontiguousarray(w_np[:, :, kh, kw].T)   # (c_in, c_out)
        for wo_ in range(self.wo):
          w_in = wo_ + kw
          r0 = kh * self.wci_pad + w_in * c_in
          c0 = wo_ * out_channels
          wm[r0:r0 + c_in, c0:c0 + out_channels] = blk
    self.wmat = jnp.asarray(wm).astype(conv_dtype)
    bias_row = np.zeros((1, self.wc_pad), np.float32)
    bias_row[0, :self.wc] = np.tile(np.asarray(self.bias), w)
    self.bias2d = jnp.asarray(bias_row)

    # LIF constants (scalar tau path: tau.shape[0] == 1)
    self.beta = 1.0 - delta_t / float(tau_syn[0])
    self.alpha = 1.0 - delta_t / float(tau_mem[0])
    self.gamma = 1.0 - delta_t / float(tau_ref[0])
    self.inp_mult_q = 1.0 / (1.0 - self.beta)    # == tau_syn / delta_t
    self.inp_mult_p = 1.0 / (1.0 - self.alpha)   # == tau_mem / delta_t

  # ---------------------------------------------------------------------- #
  def state_init(self, batch_size, batch_tile=None):
    """batch_tile < batch_size adds a leading "parallel" grid axis (use
    batch_tile = batch_size // 2 on v7x to spread work across both TCs)."""
    self.batch = batch_size
    self.batch_tile = batch_size if batch_tile is None else batch_tile
    assert batch_size % self.batch_tile == 0
    self.num_btiles = batch_size // self.batch_tile
    self.tile_rows = self.batch_tile * self.h
    assert self.tile_rows % 8 == 0
    self.bh = batch_size * self.h
    f32 = jnp.float32
    # persistent state kept in kernel layout across calls
    self.P = jnp.zeros((self.bh, self.wci_pad), f32)
    self.Q = jnp.zeros((self.bh, self.wci_pad), f32)
    self.R = jnp.zeros((self.bh, self.wc_pad), f32)
    self.S = jnp.zeros((self.bh, self.wc_pad), f32)
    self.U = jnp.zeros((self.bh, self.wc_pad), f32)
    self.U_aux = None
    self._seq = jax.jit(self._seq_impl, donate_argnums=(1, 2, 3))

  # ---------------------------------------------------------------------- #
  def _seq_impl(self, x_seq, P, Q, R, wmat, bias2d, ro_w):
    f32 = jnp.float32
    T = x_seq.shape[0]
    b, h, w = self.batch, self.h, self.w
    c_out, hp, wp = self.out_channels, self.hp, self.wp
    bh, tile_rows = self.bh, self.tile_rows
    wci, wc = self.wci, self.wc
    wci_pad, wc_pad = self.wci_pad, self.wc_pad
    k = self.kernel_size

    # NCHW sequence -> (b,h)-row / (w,c)-lane slab, ONCE for the whole sequence.
    x = jnp.transpose(x_seq.astype(f32), (0, 1, 3, 4, 2)).reshape(T, bh, wci)
    if wci_pad != wci:
      x = jnp.pad(x, ((0, 0), (0, 0), (0, wci_pad - wci)))

    kernel = functools.partial(
        _lif_seq_kernel,
        alpha=self.alpha, beta=self.beta, gamma=self.gamma,
        mp=self.inp_mult_p, mq=self.inp_mult_q, thr=self.thr,
        ksize=k, c_out=c_out, wc_pad=wc_pad,
        pooling=self.pooling, tile_rows=tile_rows)

    # NOTE: VMEM footprint here is < 1 MiB; for large B*H*W shrink batch_tile
    # (v7x: 64 MiB physical / 32 MiB scoped) or set vmem_limit_bytes.
    outs = pl.pallas_call(
        kernel,
        grid=(self.num_btiles, T),
        in_specs=[
            pl.BlockSpec((1, tile_rows, wci_pad), lambda bt, t: (t, bt, 0)),  # x
            pl.BlockSpec((tile_rows, wci_pad), lambda bt, t: (bt, 0)),        # P0
            pl.BlockSpec((tile_rows, wci_pad), lambda bt, t: (bt, 0)),        # Q0
            pl.BlockSpec((tile_rows, wc_pad), lambda bt, t: (bt, 0)),         # R0
            pl.BlockSpec((k * wci_pad, wc_pad), lambda bt, t: (0, 0)),        # Wconv
            pl.BlockSpec((1, wc_pad), lambda bt, t: (0, 0)),                  # bias
        ],
        out_specs=[
            pl.BlockSpec((1, tile_rows, wc_pad), lambda bt, t: (t, bt, 0)),   # pooled S
            pl.BlockSpec((1, tile_rows, wc_pad), lambda bt, t: (t, bt, 0)),   # pooled sig
            pl.BlockSpec((tile_rows, wci_pad), lambda bt, t: (bt, 0)),        # P final
            pl.BlockSpec((tile_rows, wci_pad), lambda bt, t: (bt, 0)),        # Q final
            pl.BlockSpec((tile_rows, wc_pad), lambda bt, t: (bt, 0)),         # R final
            pl.BlockSpec((tile_rows, wc_pad), lambda bt, t: (bt, 0)),         # S final
            pl.BlockSpec((tile_rows, wc_pad), lambda bt, t: (bt, 0)),         # U final
        ],
        out_shape=[
            jax.ShapeDtypeStruct((T, bh, wc_pad), f32),
            jax.ShapeDtypeStruct((T, bh, wc_pad), f32),
            jax.ShapeDtypeStruct((bh, wci_pad), f32),
            jax.ShapeDtypeStruct((bh, wci_pad), f32),
            jax.ShapeDtypeStruct((bh, wc_pad), f32),
            jax.ShapeDtypeStruct((bh, wc_pad), f32),
            jax.ShapeDtypeStruct((bh, wc_pad), f32),
        ],
        input_output_aliases={1: 2, 2: 3, 3: 4},   # P, Q, R updated in place
        compiler_params=pltpu.CompilerParams(
            dimension_semantics=("parallel", "arbitrary")),
    )(x, P, Q, R, wmat, bias2d)

    ps_seq, psig_seq, p_new, q_new, r_new, s_last, u_last = outs

    # Valid pooled cells sit at (h = pooling*hp, w = pooling*wp) of the slab;
    # they only ever cover conv-valid positions (h < Ho, w < Wo).
    ps5 = ps_seq[..., :wc].reshape(T, b, h, w, c_out)
    sig5 = psig_seq[..., :wc].reshape(T, b, h, w, c_out)
    sh = slice(0, self.pooling * hp, self.pooling)
    sw = slice(0, self.pooling * wp, self.pooling)
    pooled_s = jnp.transpose(ps5[:, :, sh, sw, :], (0, 1, 4, 2, 3))   # (T,B,C,Hp,Wp)
    u_aux = jnp.transpose(sig5[:, :, sh, sw, :], (0, 1, 4, 2, 3))

    # QLinearLayerSign readout ((x @ W^T + 1)/2) + eval-mode dropout * dropout_p,
    # one einsum for the whole sequence (NCHW flatten matches u_aux layout).
    flat = u_aux.reshape(T, b, self.n_readout_in)
    rro = (jnp.einsum('tbf,nf->tbn', flat, ro_w) + 1.0) * 0.5 * self.dropout_p
    pred = jnp.argmax(rro, axis=-1)
    return pooled_s, u_aux, rro, pred, p_new, q_new, r_new, s_last, u_last

  # ---------------------------------------------------------------------- #
  def forward_sequence(self, x_seq, y_local=None, train_flag=False,
                       test_flag=False):
    """Run T timesteps in one fused kernel call. x_seq: (T, B, C, H, W)."""
    assert x_seq.shape[1] == self.batch
    (pooled_s, u_aux, _rro, pred,
     self.P, self.Q, self.R, self.S, self.U) = self._seq(
        x_seq, self.P, self.Q, self.R, self.wmat, self.bias2d, self.ro_weights)
    loss_gen = None
    parts = [None, None, None]
    if test_flag or train_flag:
      self.U_aux = u_aux
      # TODO(synk): train_flag loss branch (loss_fn / SSE + l1/l2 regularizers)
      # not implemented (depends on an external loss_fn / quantization module).
      return pooled_s, loss_gen, pred, parts
    return pooled_s, loss_gen, jnp.zeros((x_seq.shape[0], 1), jnp.int32), parts

  def forward(self, input_t, y_local=None, train_flag=False, test_flag=False):
    """Per-timestep API matching the torch module. input_t: (B, C, H, W)."""
    assert input_t.shape[0] == self.batch
    (pooled_s, u_aux, _rro, pred,
     self.P, self.Q, self.R, self.S, self.U) = self._seq(
        input_t[None], self.P, self.Q, self.R,
        self.wmat, self.bias2d, self.ro_weights)
    loss_gen = None
    parts = [None, None, None]
    if test_flag or train_flag:
      self.U_aux = u_aux[0]
      return pooled_s[0], loss_gen, pred[0], parts
    # mirror the source: rreadout = [[0]] -> argmax == [0]
    return pooled_s[0], loss_gen, jnp.zeros((1,), jnp.int32), parts

  # --------------------------- NCHW state views ---------------------------- #
  def P_nchw(self):
    return jnp.transpose(
        self.P[:, :self.wci].reshape(self.batch, self.h, self.w, self.c_in),
        (0, 3, 1, 2))

  def Q_nchw(self):
    return jnp.transpose(
        self.Q[:, :self.wci].reshape(self.batch, self.h, self.w, self.c_in),
        (0, 3, 1, 2))

  def _conv_state_nchw(self, a):
    a4 = a[:, :self.wc].reshape(self.batch, self.h, self.w, self.out_channels)
    return jnp.transpose(a4[:, :self.ho, :self.wo, :], (0, 3, 1, 2))

  def R_nchw(self): return self._conv_state_nchw(self.R)
  def S_nchw(self): return self._conv_state_nchw(self.S)
  def U_nchw(self): return self._conv_state_nchw(self.U)


# ----------------------------------- main ------------------------------------

if __name__ == "__main__":
  key = jax.random.PRNGKey(0)
  k_params, k_x = jax.random.split(key)

  inp_shape = (4, 16, 16)            # (C_in, H, W)
  batch = 2
  T = 4

  layer = LIFConv2dLayerPallas(
      k_params,
      inp_shape=inp_shape,
      kernel_size=3,
      out_channels=8,
      tau_syn=jnp.array([5.0]),
      tau_mem=jnp.array([10.0]),
      tau_ref=jnp.array([2.5]),
      delta_t=1.0,
      pooling=2,
      padding=0,
      thr=1.0,
      dropout_p=0.5,
      output_neurons=10,
      weight_mult=1.0,
      conv_dtype=jnp.float32,   # set jnp.bfloat16 on v6e/v7x for bf16 MXU ops
  )
  layer.state_init(batch)           # pass batch_tile=batch//2 on v7x (2 TCs)

  # binary "spike" inputs for T timesteps (NCHW per step)
  x_seq = (jax.random.uniform(k_x, (T, batch) + inp_shape) < 0.3).astype(
      jnp.float32)

  # whole sequence in one fused kernel call
  pooled_s_seq, loss_gen, preds, parts = layer.forward_sequence(
      x_seq, test_flag=True)

  # one extra step through the per-timestep (module-style) API
  pooled_s, _, pred, _ = layer.forward(x_seq[0], test_flag=True)

  jax.block_until_ready((pooled_s_seq, preds, pooled_s, pred, layer.U_aux,
                         layer.P_nchw(), layer.Q_nchw(), layer.R_nchw(),
                         layer.S_nchw(), layer.U_nchw()))
  print("KERNEL_OK")
</pallas_src>

<mosaic_0001>
module attributes {stable_mosaic.version = 11 : i64} {
  func.func @_lif_seq_kernel(%arg0: i32, %arg1: i32, %arg2: memref<1x32x128xf32, #tpu.memory_space<vmem>>, %arg3: memref<32x128xf32, #tpu.memory_space<vmem>>, %arg4: memref<32x128xf32, #tpu.memory_space<vmem>>, %arg5: memref<32x128xf32, #tpu.memory_space<vmem>>, %arg6: memref<384x128xf32, #tpu.memory_space<vmem>>, %arg7: memref<1x128xf32, #tpu.memory_space<vmem>>, %arg8: memref<1x32x128xf32, #tpu.memory_space<vmem>>, %arg9: memref<1x32x128xf32, #tpu.memory_space<vmem>>, %arg10: memref<32x128xf32, #tpu.memory_space<vmem>>, %arg11: memref<32x128xf32, #tpu.memory_space<vmem>>, %arg12: memref<32x128xf32, #tpu.memory_space<vmem>>, %arg13: memref<32x128xf32, #tpu.memory_space<vmem>>, %arg14: memref<32x128xf32, #tpu.memory_space<vmem>>) attributes {dimension_semantics = [#tpu.dimension_semantics<parallel>, #tpu.dimension_semantics<arbitrary>], iteration_bounds = array<i64: 1, 4>, scalar_prefetch = 0 : i64, scratch_operands = 0 : i64, tpu.core_type = #tpu.core_type<tc>, window_params = [{transform_indices = @transform_0, window_bounds = array<i64: 1, 32, 128>}, {transform_indices = @transform_1, window_bounds = array<i64: 32, 128>}, {transform_indices = @transform_2, window_bounds = array<i64: 32, 128>}, {transform_indices = @transform_3, window_bounds = array<i64: 32, 128>}, {pipeline_mode = #tpu.pipeline_mode<synchronous>, transform_indices = @transform_4, window_bounds = array<i64: 384, 128>}, {pipeline_mode = #tpu.pipeline_mode<synchronous>, transform_indices = @transform_5, window_bounds = array<i64: 1, 128>}, {transform_indices = @transform_6, window_bounds = array<i64: 1, 32, 128>}, {transform_indices = @transform_7, window_bounds = array<i64: 1, 32, 128>}, {transform_indices = @transform_8, window_bounds = array<i64: 32, 128>}, {transform_indices = @transform_9, window_bounds = array<i64: 32, 128>}, {transform_indices = @transform_10, window_bounds = array<i64: 32, 128>}, {transform_indices = @transform_11, window_bounds = array<i64: 32, 128>}, {transform_indices = @transform_12, window_bounds = array<i64: 32, 128>}]} {
    %c0_i32 = arith.constant 0 : i32
    %0 = arith.cmpi eq, %arg1, %c0_i32 : i32
    %1 = arith.extui %0 : i1 to i32
    %c0_i32_0 = arith.constant 0 : i32
    %2 = arith.cmpi ne, %1, %c0_i32_0 : i32
    scf.if %2 {
      %c0_36 = arith.constant 0 : index
      %c0_37 = arith.constant 0 : index
      %61 = vector.load %arg3[%c0_36, %c0_37] : memref<32x128xf32, #tpu.memory_space<vmem>>, vector<32x128xf32>
      %c0_38 = arith.constant 0 : index
      %c0_39 = arith.constant 0 : index
      %62 = vector.load %arg10[%c0_38, %c0_39] : memref<32x128xf32, #tpu.memory_space<vmem>>, vector<32x128xf32>
      tpu.vector_store %arg10[%c0_38, %c0_39], %61 {strides = array<i32>} : memref<32x128xf32, #tpu.memory_space<vmem>>, vector<32x128xf32>,
      %c0_40 = arith.constant 0 : index
      %c0_41 = arith.constant 0 : index
      %63 = vector.load %arg4[%c0_40, %c0_41] : memref<32x128xf32, #tpu.memory_space<vmem>>, vector<32x128xf32>
      %c0_42 = arith.constant 0 : index
      %c0_43 = arith.constant 0 : index
      %64 = vector.load %arg11[%c0_42, %c0_43] : memref<32x128xf32, #tpu.memory_space<vmem>>, vector<32x128xf32>
      tpu.vector_store %arg11[%c0_42, %c0_43], %63 {strides = array<i32>} : memref<32x128xf32, #tpu.memory_space<vmem>>, vector<32x128xf32>,
      %c0_44 = arith.constant 0 : index
      %c0_45 = arith.constant 0 : index
      %65 = vector.load %arg5[%c0_44, %c0_45] : memref<32x128xf32, #tpu.memory_space<vmem>>, vector<32x128xf32>
      %c0_46 = arith.constant 0 : index
      %c0_47 = arith.constant 0 : index
      %66 = vector.load %arg12[%c0_46, %c0_47] : memref<32x128xf32, #tpu.memory_space<vmem>>, vector<32x128xf32>
      tpu.vector_store %arg12[%c0_46, %c0_47], %65 {strides = array<i32>} : memref<32x128xf32, #tpu.memory_space<vmem>>, vector<32x128xf32>,
    } else {
    }
    %c0 = arith.constant 0 : index
    %c0_1 = arith.constant 0 : index
    %c0_2 = arith.constant 0 : index
    %3 = vector.load %arg2[%c0, %c0_1, %c0_2] : memref<1x32x128xf32, #tpu.memory_space<vmem>>, vector<1x32x128xf32>
    %4 = vector.shape_cast %3 : vector<1x32x128xf32> to vector<32x128xf32>
    %c0_3 = arith.constant 0 : index
    %c0_4 = arith.constant 0 : index
    %5 = vector.load %arg11[%c0_3, %c0_4] : memref<32x128xf32, #tpu.memory_space<vmem>>, vector<32x128xf32>
    %c0_5 = arith.constant 0 : index
    %c0_6 = arith.constant 0 : index
    %6 = vector.load %arg10[%c0_5, %c0_6] : memref<32x128xf32, #tpu.memory_space<vmem>>, vector<32x128xf32>
    %cst = arith.constant 0.899999976 : f32
    %7 = vector.broadcast %cst : f32 to vector<32x128xf32>
    %8 = arith.mulf %7, %6 : vector<32x128xf32>
    %cst_7 = arith.constant 1.000000e+01 : f32
    %9 = vector.broadcast %cst_7 : f32 to vector<32x128xf32>
    %10 = arith.mulf %9, %5 : vector<32x128xf32>
    %11 = arith.addf %8, %10 : vector<32x128xf32>
    %c0_8 = arith.constant 0 : index
    %c0_9 = arith.constant 0 : index
    %12 = vector.load %arg10[%c0_8, %c0_9] : memref<32x128xf32, #tpu.memory_space<vmem>>, vector<32x128xf32>
    tpu.vector_store %arg10[%c0_8, %c0_9], %11 {strides = array<i32>} : memref<32x128xf32, #tpu.memory_space<vmem>>, vector<32x128xf32>,
    %cst_10 = arith.constant 8.000000e-01 : f32
    %13 = vector.broadcast %cst_10 : f32 to vector<32x128xf32>
    %14 = arith.mulf %13, %5 : vector<32x128xf32>
    %cst_11 = arith.constant 5.000000e+00 : f32
    %15 = vector.broadcast %cst_11 : f32 to vector<32x128xf32>
    %16 = arith.mulf %15, %4 : vector<32x128xf32>
    %17 = arith.addf %14, %16 : vector<32x128xf32>
    %c0_12 = arith.constant 0 : index
    %c0_13 = arith.constant 0 : index
    %18 = vector.load %arg11[%c0_12, %c0_13] : memref<32x128xf32, #tpu.memory_space<vmem>>, vector<32x128xf32>
    tpu.vector_store %arg11[%c0_12, %c0_13], %17 {strides = array<i32>} : memref<32x128xf32, #tpu.memory_space<vmem>>, vector<32x128xf32>,
    %c31_i32 = arith.constant 31 : i32
    %19 = tpu.dynamic_rotate %11 by %c31_i32 dim 0 : vector<32x128xf32>, i32 -> vector<32x128xf32>
    %c30_i32 = arith.constant 30 : i32
    %20 = tpu.dynamic_rotate %11 by %c30_i32 dim 0 : vector<32x128xf32>, i32 -> vector<32x128xf32>
    %21 = tpu.concatenate %11, %19, %20 in 1 : vector<32x128xf32>, vector<32x128xf32>, vector<32x128xf32> -> vector<32x384xf32>
    %c0_14 = arith.constant 0 : index
    %c0_15 = arith.constant 0 : index
    %22 = vector.load %arg6[%c0_14, %c0_15] : memref<384x128xf32, #tpu.memory_space<vmem>>, vector<384x128xf32>
    %cst_16 = arith.constant dense<0.000000e+00> : vector<32x128xf32>
    %23 = tpu.matmul %21, %22, %cst_16 {dimension_numbers = #tpu.dot_dimension_numbers<[1], [0], [0], [1], [0, 0, 1, 1], [], []>} : vector<32x384xf32>, vector<384x128xf32>, vector<32x128xf32> -> vector<32x128xf32>
    %c0_17 = arith.constant 0 : index
    %c0_18 = arith.constant 0 : index
    %24 = vector.load %arg7[%c0_17, %c0_18] : memref<1x128xf32, #tpu.memory_space<vmem>>, vector<1x128xf32>
    %25 = vector.broadcast %24 : vector<1x128xf32> to vector<32x128xf32>
    %26 = arith.addf %23, %25 : vector<32x128xf32>
    %c0_19 = arith.constant 0 : index
    %c0_20 = arith.constant 0 : index
    %27 = vector.load %arg12[%c0_19, %c0_20] : memref<32x128xf32, #tpu.memory_space<vmem>>, vector<32x128xf32>
    %cst_21 = arith.constant 6.000000e-01 : f32
    %28 = vector.broadcast %cst_21 : f32 to vector<32x128xf32>
    %29 = arith.mulf %28, %27 : vector<32x128xf32>
    %30 = arith.subf %26, %29 : vector<32x128xf32>
    %cst_22 = arith.constant 1.000000e+00 : f32
    %31 = vector.broadcast %cst_22 : f32 to vector<32x128xf32>
    %32 = arith.cmpf oge, %30, %31 : vector<32x128xf32>
    %33 = arith.extui %32 : vector<32x128xi1> to vector<32x128xi32>
    %34 = arith.sitofp %33 : vector<32x128xi32> to vector<32x128xf32>
    %cst_23 = arith.constant 6.000000e-01 : f32
    %35 = vector.broadcast %cst_23 : f32 to vector<32x128xf32>
    %36 = arith.mulf %35, %27 : vector<32x128xf32>
    %37 = arith.addf %36, %34 : vector<32x128xf32>
    %c0_24 = arith.constant 0 : index
    %c0_25 = arith.constant 0 : index
    %38 = vector.load %arg12[%c0_24, %c0_25] : memref<32x128xf32, #tpu.memory_space<vmem>>, vector<32x128xf32>
    tpu.vector_store %arg12[%c0_24, %c0_25], %37 {strides = array<i32>} : memref<32x128xf32, #tpu.memory_space<vmem>>, vector<32x128xf32>,
    %c120_i32 = arith.constant 120 : i32
    %39 = tpu.dynamic_rotate %30 by %c120_i32 dim 1 : vector<32x128xf32>, i32 -> vector<32x128xf32>
    %40 = arith.maximumf %30, %39 : vector<32x128xf32>
    %c31_i32_26 = arith.constant 31 : i32
    %41 = tpu.dynamic_rotate %40 by %c31_i32_26 dim 0 : vector<32x128xf32>, i32 -> vector<32x128xf32>
    %42 = arith.maximumf %40, %41 : vector<32x128xf32>
    %cst_27 = arith.constant 1.000000e+00 : f32
    %43 = vector.broadcast %cst_27 : f32 to vector<32x128xf32>
    %44 = arith.cmpf oge, %42, %43 : vector<32x128xf32>
    %45 = arith.extui %44 : vector<32x128xi1> to vector<32x128xi32>
    %46 = arith.sitofp %45 : vector<32x128xi32> to vector<32x128xf32>
    %c0_28 = arith.constant 0 : index
    %c0_29 = arith.constant 0 : index
    %c0_30 = arith.constant 0 : index
    %47 = vector.load %arg8[%c0_28, %c0_29, %c0_30] : memref<1x32x128xf32, #tpu.memory_space<vmem>>, vector<1x32x128xf32>
    %48 = vector.shape_cast %47 : vector<1x32x128xf32> to vector<32x128xf32>
    %49 = vector.shape_cast %46 : vector<32x128xf32> to vector<1x32x128xf32>
    tpu.vector_store %arg8[%c0_28, %c0_29, %c0_30], %49 {strides = array<i32>} : memref<1x32x128xf32, #tpu.memory_space<vmem>>, vector<1x32x128xf32>,
    %50 = arith.negf %42 : vector<32x128xf32>
    %51 = math.exp %50 : vector<32x128xf32>
    %cst_31 = arith.constant 1.000000e+00 : f32
    %52 = vector.broadcast %cst_31 : f32 to vector<32x128xf32>
    %53 = arith.addf %52, %51 : vector<32x128xf32>
    %54 = arith.divf %52, %53 : vector<32x128xf32>
    %c0_32 = arith.constant 0 : index
    %c0_33 = arith.constant 0 : index
    %c0_34 = arith.constant 0 : index
    %55 = vector.load %arg9[%c0_32, %c0_33, %c0_34] : memref<1x32x128xf32, #tpu.memory_space<vmem>>, vector<1x32x128xf32>
    %56 = vector.shape_cast %55 : vector<1x32x128xf32> to vector<32x128xf32>
    %57 = vector.shape_cast %54 : vector<32x128xf32> to vector<1x32x128xf32>
    tpu.vector_store %arg9[%c0_32, %c0_33, %c0_34], %57 {strides = array<i32>} : memref<1x32x128xf32, #tpu.memory_space<vmem>>, vector<1x32x128xf32>,
    %c3_i32 = arith.constant 3 : i32
    %58 = arith.cmpi eq, %arg1, %c3_i32 : i32
    %59 = arith.extui %58 : i1 to i32
    %c0_i32_35 = arith.constant 0 : i32
    %60 = arith.cmpi ne, %59, %c0_i32_35 : i32
    scf.if %60 {
      %c0_36 = arith.constant 0 : index
      %c0_37 = arith.constant 0 : index
      %61 = vector.load %arg13[%c0_36, %c0_37] : memref<32x128xf32, #tpu.memory_space<vmem>>, vector<32x128xf32>
      tpu.vector_store %arg13[%c0_36, %c0_37], %34 {strides = array<i32>} : memref<32x128xf32, #tpu.memory_space<vmem>>, vector<32x128xf32>,
      %c0_38 = arith.constant 0 : index
      %c0_39 = arith.constant 0 : index
      %62 = vector.load %arg14[%c0_38, %c0_39] : memref<32x128xf32, #tpu.memory_space<vmem>>, vector<32x128xf32>
      tpu.vector_store %arg14[%c0_38, %c0_39], %30 {strides = array<i32>} : memref<32x128xf32, #tpu.memory_space<vmem>>, vector<32x128xf32>,
    } else {
    }
    return
  }
  func.func @transform_0(%arg0: i32, %arg1: i32) -> (i32, i32, i32) {
    %c0_i32 = arith.constant 0 : i32
    %c0_i32_0 = arith.constant 0 : i32
    return %arg1, %arg0, %c0_i32 : i32, i32, i32
  }
  func.func @transform_1(%arg0: i32, %arg1: i32) -> (i32, i32) {
    %c0_i32 = arith.constant 0 : i32
    %c0_i32_0 = arith.constant 0 : i32
    return %arg0, %c0_i32 : i32, i32
  }
  func.func @transform_2(%arg0: i32, %arg1: i32) -> (i32, i32) {
    %c0_i32 = arith.constant 0 : i32
    %c0_i32_0 = arith.constant 0 : i32
    return %arg0, %c0_i32 : i32, i32
  }
  func.func @transform_3(%arg0: i32, %arg1: i32) -> (i32, i32) {
    %c0_i32 = arith.constant 0 : i32
    %c0_i32_0 = arith.constant 0 : i32
    return %arg0, %c0_i32 : i32, i32
  }
  func.func @transform_4(%arg0: i32, %arg1: i32) -> (i32, i32) {
    %c0_i32 = arith.constant 0 : i32
    %c0_i32_0 = arith.constant 0 : i32
    %c0_i32_1 = arith.constant 0 : i32
    return %c0_i32, %c0_i32_0 : i32, i32
  }
  func.func @transform_5(%arg0: i32, %arg1: i32) -> (i32, i32) {
    %c0_i32 = arith.constant 0 : i32
    %c0_i32_0 = arith.constant 0 : i32
    %c0_i32_1 = arith.constant 0 : i32
    return %c0_i32, %c0_i32_0 : i32, i32
  }
  func.func @transform_6(%arg0: i32, %arg1: i32) -> (i32, i32, i32) {
    %c0_i32 = arith.constant 0 : i32
    %c0_i32_0 = arith.constant 0 : i32
    return %arg1, %arg0, %c0_i32 : i32, i32, i32
  }
  func.func @transform_7(%arg0: i32, %arg1: i32) -> (i32, i32, i32) {
    %c0_i32 = arith.constant 0 : i32
    %c0_i32_0 = arith.constant 0 : i32
    return %arg1, %arg0, %c0_i32 : i32, i32, i32
  }
  func.func @transform_8(%arg0: i32, %arg1: i32) -> (i32, i32) {
    %c0_i32 = arith.constant 0 : i32
    %c0_i32_0 = arith.constant 0 : i32
    return %arg0, %c0_i32 : i32, i32
  }
  func.func @transform_9(%arg0: i32, %arg1: i32) -> (i32, i32) {
    %c0_i32 = arith.constant 0 : i32
    %c0_i32_0 = arith.constant 0 : i32
    return %arg0, %c0_i32 : i32, i32
  }
  func.func @transform_10(%arg0: i32, %arg1: i32) -> (i32, i32) {
    %c0_i32 = arith.constant 0 : i32
    %c0_i32_0 = arith.constant 0 : i32
    return %arg0, %c0_i32 : i32, i32
  }
  func.func @transform_11(%arg0: i32, %arg1: i32) -> (i32, i32) {
    %c0_i32 = arith.constant 0 : i32
    %c0_i32_0 = arith.constant 0 : i32
    return %arg0, %c0_i32 : i32, i32
  }
  func.func @transform_12(%arg0: i32, %arg1: i32) -> (i32, i32) {
    %c0_i32 = arith.constant 0 : i32
    %c0_i32_0 = arith.constant 0 : i32
    return %arg0, %c0_i32 : i32, i32
  }
}

</mosaic_0001>

<llo_original>
// kernel: _seq_impl.1
$region0: #{_seq_impl.1}
  #allocation0 [shape = 'u32[]', space=smem, size = 0x4, offset = 0x4, fixed_abs, tag = 'smem constant byte address 0x4 - core index']
  #allocation1 [shape = 'u32[72,128]{1,0:T(1,128)}', space=vmem, size = 0x9000, scoped, tag = 'internal scratch']
  %s0 = inlined_call_operand.vmem [shape: f32[4,32,128], index: 0, kind: input, shape index: {}]
  %s1 = inlined_call_operand.vmem [shape: f32[32,128], index: 1, kind: input, shape index: {}, may-alias: {1,8}]
  %s2 = inlined_call_operand.vmem [shape: f32[32,128], index: 2, kind: input, shape index: {}, may-alias: {2,9}]
  %s3 = inlined_call_operand.vmem [shape: f32[32,128], index: 3, kind: input, shape index: {}, may-alias: {3,10}]
  %s4 = inlined_call_operand.vmem [shape: f32[384,128], index: 4, kind: input, shape index: {}]
  %s5 = inlined_call_operand.vmem [shape: f32[1,128], index: 5, kind: input, shape index: {}]
  %s6 = inlined_call_operand.vmem [shape: f32[4,32,128], index: 6, kind: output, shape index: {0}]
  %s7 = inlined_call_operand.vmem [shape: f32[4,32,128], index: 7, kind: output, shape index: {1}]
  %s8 = inlined_call_operand.vmem [shape: f32[32,128], index: 8, kind: output, shape index: {2}, may-alias: {1,8}]
  %s9 = inlined_call_operand.vmem [shape: f32[32,128], index: 9, kind: output, shape index: {3}, may-alias: {2,9}]
  %s10 = inlined_call_operand.vmem [shape: f32[32,128], index: 10, kind: output, shape index: {4}, may-alias: {3,10}]
  %s11 = inlined_call_operand.hbm [shape: f32[32,128], index: 11, kind: output, shape index: {5}]
  %s12 = inlined_call_operand.hbm [shape: f32[32,128], index: 12, kind: output, shape index: {6}]
  %13 = xla_tuple %s6, %s7, %s8, %s9, %s10, %s11, %s12
  %s14 = sld [smem:[#allocation0]]
  $region113: #{_seq_impl.1} parent=0
    _
  %s16 = ssub.s32 1, %s14
  %s17 = scalar_select 0, %s16, %s14
  $region1: #{_seq_impl.1} parent=0
    #allocation2 [shape = 'u8[16384]{0}', space=vmem, size = 0x4000, scoped, tag = 'output window, operand 5, single buffered']
    #allocation3 [shape = 's32[2]{0}', space=sflag, size = 0x8, scoped, tag = 'scoped memory for _seq_impl.1']
    #allocation4 [shape = 'u8[16384]{0}', space=vmem, size = 0x4000, scoped, tag = 'output window, operand 6, single buffered']
    #allocation5 [shape = 's32[1]{0}', space=sflag, size = 0x4, scoped, tag = 'scoped memory for _seq_impl.1']
    %18 = vsyncpa [#allocation3], 0
    %19 = vsyncpa [#allocation5], 0
    loop: start=0, step=1, limit=6
    $region2: #{_seq_impl.1} parent=1 // loop_pre_header
      _
    $region3: #{_seq_impl.1} parent=1 // loop_header
      %s21 = sphi 0, %s25
      %p22 = scmp.ge.s32.totalorder %s21, 6
      %s28 = sphi 0, %s40
      %s29 = sphi 0, %s36
      %s30 = sphi 0, %s28
      %s31 = sphi 0, %s29
      %s32 = sphi 0, %s30
      %s33 = sphi 0, %s31
      %s45 = sphi 0, %s47
      %s48 = sphi 0, %s45
      %s49 = sphi 0, %s48
      %s65 = sphi 0, %s49
      %s71 = sphi 0, %s73
      %s74 = sphi 0, %s71
      %s75 = sphi 0, %s74
      %s91 = sphi 0, %s75
      %s97 = sphi 0, %s99
      %s100 = sphi 0, %s97
      %s101 = sphi 0, %s100
      %s117 = sphi 0, %s101
      %s123 = sphi 0, %s125
      %s126 = sphi 0, %s123
      %s127 = sphi 0, %s126
      %s143 = sphi 0, %s127
      %s147 = sphi 0, %s147
      %s149 = sphi 0, %s147
      %s150 = sphi 0, %s149
      %s164 = sphi 0, %s150
      %s168 = sphi 0, %s168
      %s170 = sphi 0, %s168
      %s171 = sphi 0, %s170
      %s185 = sphi 0, %s171
      %s193 = sphi 0, %s195
      %s196 = sphi 0, %s193
      %s197 = sphi 0, %s196
      %s213 = sphi 0, %s197
      %s221 = sphi 0, %s223
      %s224 = sphi 0, %s221
      %s225 = sphi 0, %s224
      %s241 = sphi 0, %s225
      %s247 = sphi 0, %s249
      %s250 = sphi 0, %s247
      %s251 = sphi 0, %s250
      %s267 = sphi 0, %s251
      %s273 = sphi 0, %s275
      %s276 = sphi 0, %s273
      %s277 = sphi 0, %s276
      %s293 = sphi 0, %s277
      %s299 = sphi 0, %s301
      %s302 = sphi 0, %s299
      %s303 = sphi 0, %s302
      %s319 = sphi 0, %s303
      %s325 = sphi 0, %s327
      %s328 = sphi 0, %s325
      %s329 = sphi 0, %s328
      %s345 = sphi 0, %s329
      %s351 = sphi 0, %s353
      %s354 = sphi 0, %s351
      %s355 = sphi 0, %s354
      %s371 = sphi 0, %s355
    $region4: #{_seq_impl.1} parent=1 // loop_header_branch
      %24 = sbr.rel (%p22) target = $region8
    $region5: #{_seq_impl.1} parent=1 // loop_body
      %s26 = ssub.s32 %s21, 1
      %s27 = ssub.s32 %s21, 2
      %s34 = sadd.s32 1, %s29
      %p35 = scmp.ge.s32.totalorder %s34, 4
      %s36 = scalar_select %p35, 0, %s34
      %s37 = sadd.s32 1, %s28
      %s38 = scalar_select %p35, %s37, %s28
      %p39 = scmp.ge.s32.totalorder %s38, 1
      %s40 = scalar_select %p39, 0, %s38
      %s41 = ssub.s32 %s29, %s36
      %s42 = ssub.s32 %s28, %s40
      %s43 = sor.u32 %s41, %s42
      %p44 = scmp.eq.s32.totalorder %s43, 0
      %s46 = sadd.s32 %s45, 1
      %s47 = scalar_select %p44, %s45, %s46
      %p50 = pneg %p44
      %p51 = scmp.eq.s32.totalorder %s21, 3
      %p52 = por %p50, %p51
      %p53 = scmp.ne.s32.totalorder %s45, %s48
      %p54 = scmp.eq.s32.totalorder %s21, 0
      %p55 = por %p53, %p54
      %p56 = scmp.ne.s32.totalorder %s45, %s48
      %p57 = scmp.eq.s32.totalorder %s26, 3
      %p58 = por %p56, %p57
      %p59 = scmp.ne.s32.totalorder %s48, %s49
      %p60 = scmp.eq.s32.totalorder %s26, 0
      %p61 = por %p59, %p60
      %p62 = scmp.ne.s32.totalorder %s48, %s49
      %p63 = scmp.eq.s32.totalorder %s27, 3
      %p64 = por %p62, %p63
      %p66 = scmp.ne.s32.totalorder %s49, %s65
      %p67 = scmp.eq.s32.totalorder %s27, 0
      %p68 = por %p66, %p67
      %s69 = ssub.s32 %s28, %s40
      %p70 = scmp.eq.s32.totalorder %s69, 0
      %s72 = sadd.s32 %s71, 1
      %s73 = scalar_select %p70, %s71, %s72
      %p76 = pneg %p70
      %p77 = scmp.eq.s32.totalorder %s21, 3
      %p78 = por %p76, %p77
      %p79 = scmp.ne.s32.totalorder %s71, %s74
      %p80 = scmp.eq.s32.totalorder %s21, 0
      %p81 = por %p79, %p80
      %p82 = scmp.ne.s32.totalorder %s71, %s74
      %p83 = scmp.eq.s32.totalorder %s26, 3
      %p84 = por %p82, %p83
      %p85 = scmp.ne.s32.totalorder %s74, %s75
      %p86 = scmp.eq.s32.totalorder %s26, 0
      %p87 = por %p85, %p86
      %p88 = scmp.ne.s32.totalorder %s74, %s75
      %p89 = scmp.eq.s32.totalorder %s27, 3
      %p90 = por %p88, %p89
      %p92 = scmp.ne.s32.totalorder %s75, %s91
      %p93 = scmp.eq.s32.totalorder %s27, 0
      %p94 = por %p92, %p93
      %s95 = ssub.s32 %s28, %s40
      %p96 = scmp.eq.s32.totalorder %s95, 0
      %s98 = sadd.s32 %s97, 1
      %s99 = scalar_select %p96, %s97, %s98
      %p102 = pneg %p96
      %p103 = scmp.eq.s32.totalorder %s21, 3
      %p104 = por %p102, %p103
      %p105 = scmp.ne.s32.totalorder %s97, %s100
      %p106 = scmp.eq.s32.totalorder %s21, 0
      %p107 = por %p105, %p106
      %p108 = scmp.ne.s32.totalorder %s97, %s100
      %p109 = scmp.eq.s32.totalorder %s26, 3
      %p110 = por %p108, %p109
      %p111 = scmp.ne.s32.totalorder %s100, %s101
      %p112 = scmp.eq.s32.totalorder %s26, 0
      %p113 = por %p111, %p112
      %p114 = scmp.ne.s32.totalorder %s100, %s101
      %p115 = scmp.eq.s32.totalorder %s27, 3
      %p116 = por %p114, %p115
      %p118 = scmp.ne.s32.totalorder %s101, %s117
      %p119 = scmp.eq.s32.totalorder %s27, 0
      %p120 = por %p118, %p119
      %s121 = ssub.s32 %s28, %s40
      %p122 = scmp.eq.s32.totalorder %s121, 0
      %s124 = sadd.s32 %s123, 1
      %s125 = scalar_select %p122, %s123, %s124
      %p128 = pneg %p122
      %p129 = scmp.eq.s32.totalorder %s21, 3
      %p130 = por %p128, %p129
      %p131 = scmp.ne.s32.totalorder %s123, %s126
      %p132 = scmp.eq.s32.totalorder %s21, 0
      %p133 = por %p131, %p132
      %p134 = scmp.ne.s32.totalorder %s123, %s126
      %p135 = scmp.eq.s32.totalorder %s26, 3
      %p136 = por %p134, %p135
      %p137 = scmp.ne.s32.totalorder %s126, %s127
      %p138 = scmp.eq.s32.totalorder %s26, 0
      %p139 = por %p137, %p138
      %p140 = scmp.ne.s32.totalorder %s126, %s127
      %p141 = scmp.eq.s32.totalorder %s27, 3
      %p142 = por %p140, %p141
      %p144 = scmp.ne.s32.totalorder %s127, %s143
      %p145 = scmp.eq.s32.totalorder %s27, 0
      %p146 = por %p144, %p145
      %s148 = sadd.s32 %s147, 1
      %p151 = scmp.eq.s32.totalorder %s21, 3
      %p152 = scmp.ne.s32.totalorder %s147, %s149
      %p153 = scmp.eq.s32.totalorder %s21, 0
      %p154 = por %p152, %p153
      %p155 = scmp.ne.s32.totalorder %s147, %s149
      %p156 = scmp.eq.s32.totalorder %s26, 3
      %p157 = por %p155, %p156
      %p158 = scmp.ne.s32.totalorder %s149, %s150
      %p159 = scmp.eq.s32.totalorder %s26, 0
      %p160 = por %p158, %p159
      %p161 = scmp.ne.s32.totalorder %s149, %s150
      %p162 = scmp.eq.s32.totalorder %s27, 3
      %p163 = por %p161, %p162
      %p165 = scmp.ne.s32.totalorder %s150, %s164
      %p166 = scmp.eq.s32.totalorder %s27, 0
      %p167 = por %p165, %p166
      %s169 = sadd.s32 %s168, 1
      %p172 = scmp.eq.s32.totalorder %s21, 3
      %p173 = scmp.ne.s32.totalorder %s168, %s170
      %p174 = scmp.eq.s32.totalorder %s21, 0
      %p175 = por %p173, %p174
      %p176 = scmp.ne.s32.totalorder %s168, %s170
      %p177 = scmp.eq.s32.totalorder %s26, 3
      %p178 = por %p176, %p177
      %p179 = scmp.ne.s32.totalorder %s170, %s171
      %p180 = scmp.eq.s32.totalorder %s26, 0
      %p181 = por %p179, %p180
      %p182 = scmp.ne.s32.totalorder %s170, %s171
      %p183 = scmp.eq.s32.totalorder %s27, 3
      %p184 = por %p182, %p183
      %p186 = scmp.ne.s32.totalorder %s171, %s185
      %p187 = scmp.eq.s32.totalorder %s27, 0
      %p188 = por %p186, %p187
      %s189 = ssub.s32 %s29, %s36
      %s190 = ssub.s32 %s28, %s40
      %s191 = sor.u32 %s189, %s190
      %p192 = scmp.eq.s32.totalorder %s191, 0
      %s194 = sadd.s32 %s193, 1
      %s195 = scalar_select %p192, %s193, %s194
      %p198 = pneg %p192
      %p199 = scmp.eq.s32.totalorder %s21, 3
      %p200 = por %p198, %p199
      %p201 = scmp.ne.s32.totalorder %s193, %s196
      %p202 = scmp.eq.s32.totalorder %s21, 0
      %p203 = por %p201, %p202
      %p204 = scmp.ne.s32.totalorder %s193, %s196
      %p205 = scmp.eq.s32.totalorder %s26, 3
      %p206 = por %p204, %p205
      %p207 = scmp.ne.s32.totalorder %s196, %s197
      %p208 = scmp.eq.s32.totalorder %s26, 0
      %p209 = por %p207, %p208
      %p210 = scmp.ne.s32.totalorder %s196, %s197
      %p211 = scmp.eq.s32.totalorder %s27, 3
      %p212 = por %p210, %p211
      %p214 = scmp.ne.s32.totalorder %s197, %s213
      %p215 = scmp.eq.s32.totalorder %s27, 0
      %p216 = por %p214, %p215
      %s217 = ssub.s32 %s29, %s36
      %s218 = ssub.s32 %s28, %s40
      %s219 = sor.u32 %s217, %s218
      %p220 = scmp.eq.s32.totalorder %s219, 0
      %s222 = sadd.s32 %s221, 1
      %s223 = scalar_select %p220, %s221, %s222
      %p226 = pneg %p220
      %p227 = scmp.eq.s32.totalorder %s21, 3
      %p228 = por %p226, %p227
      %p229 = scmp.ne.s32.totalorder %s221, %s224
      %p230 = scmp.eq.s32.totalorder %s21, 0
      %p231 = por %p229, %p230
      %p232 = scmp.ne.s32.totalorder %s221, %s224
      %p233 = scmp.eq.s32.totalorder %s26, 3
      %p234 = por %p232, %p233
      %p235 = scmp.ne.s32.totalorder %s224, %s225
      %p236 = scmp.eq.s32.totalorder %s26, 0
      %p237 = por %p235, %p236
      %p238 = scmp.ne.s32.totalorder %s224, %s225
      %p239 = scmp.eq.s32.totalorder %s27, 3
      %p240 = por %p238, %p239
      %p242 = scmp.ne.s32.totalorder %s225, %s241
      %p243 = scmp.eq.s32.totalorder %s27, 0
      %p244 = por %p242, %p243
      %s245 = ssub.s32 %s28, %s40
      %p246 = scmp.eq.s32.totalorder %s245, 0
      %s248 = sadd.s32 %s247, 1
      %s249 = scalar_select %p246, %s247, %s248
      %p252 = pneg %p246
      %p253 = scmp.eq.s32.totalorder %s21, 3
      %p254 = por %p252, %p253
      %p255 = scmp.ne.s32.totalorder %s247, %s250
      %p256 = scmp.eq.s32.totalorder %s21, 0
      %p257 = por %p255, %p256
      %p258 = scmp.ne.s32.totalorder %s247, %s250
      %p259 = scmp.eq.s32.totalorder %s26, 3
      %p260 = por %p258, %p259
      %p261 = scmp.ne.s32.totalorder %s250, %s251
      %p262 = scmp.eq.s32.totalorder %s26, 0
      %p263 = por %p261, %p262
      %p264 = scmp.ne.s32.totalorder %s250, %s251
      %p265 = scmp.eq.s32.totalorder %s27, 3
      %p266 = por %p264, %p265
      %p268 = scmp.ne.s32.totalorder %s251, %s267
      %p269 = scmp.eq.s32.totalorder %s27, 0
      %p270 = por %p268, %p269
      %s271 = ssub.s32 %s28, %s40
      %p272 = scmp.eq.s32.totalorder %s271, 0
      %s274 = sadd.s32 %s273, 1
      %s275 = scalar_select %p272, %s273, %s274
      %p278 = pneg %p272
      %p279 = scmp.eq.s32.totalorder %s21, 3
      %p280 = por %p278, %p279
      %p281 = scmp.ne.s32.totalorder %s273, %s276
      %p282 = scmp.eq.s32.totalorder %s21, 0
      %p283 = por %p281, %p282
      %p284 = scmp.ne.s32.totalorder %s273, %s276
      %p285 = scmp.eq.s32.totalorder %s26, 3
      %p286 = por %p284, %p285
      %p287 = scmp.ne.s32.totalorder %s276, %s277
      %p288 = scmp.eq.s32.totalorder %s26, 0
      %p289 = por %p287, %p288
      %p290 = scmp.ne.s32.totalorder %s276, %s277
      %p291 = scmp.eq.s32.totalorder %s27, 3
      %p292 = por %p290, %p291
      %p294 = scmp.ne.s32.totalorder %s277, %s293
      %p295 = scmp.eq.s32.totalorder %s27, 0
      %p296 = por %p294, %p295
      %s297 = ssub.s32 %s28, %s40
      %p298 = scmp.eq.s32.totalorder %s297, 0
      %s300 = sadd.s32 %s299, 1
      %s301 = scalar_select %p298, %s299, %s300
      %p304 = pneg %p298
      %p305 = scmp.eq.s32.totalorder %s21, 3
      %p306 = por %p304, %p305
      %p307 = scmp.ne.s32.totalorder %s299, %s302
      %p308 = scmp.eq.s32.totalorder %s21, 0
      %p309 = por %p307, %p308
      %p310 = scmp.ne.s32.totalorder %s299, %s302
      %p311 = scmp.eq.s32.totalorder %s26, 3
      %p312 = por %p310, %p311
      %p313 = scmp.ne.s32.totalorder %s302, %s303
      %p314 = scmp.eq.s32.totalorder %s26, 0
      %p315 = por %p313, %p314
      %p316 = scmp.ne.s32.totalorder %s302, %s303
      %p317 = scmp.eq.s32.totalorder %s27, 3
      %p318 = por %p316, %p317
      %p320 = scmp.ne.s32.totalorder %s303, %s319
      %p321 = scmp.eq.s32.totalorder %s27, 0
      %p322 = por %p320, %p321
      %s323 = ssub.s32 %s28, %s40
      %p324 = scmp.eq.s32.totalorder %s323, 0
      %s326 = sadd.s32 %s325, 1
      %s327 = scalar_select %p324, %s325, %s326
      %p330 = pneg %p324
      %p331 = scmp.eq.s32.totalorder %s21, 3
      %p332 = por %p330, %p331
      %p333 = scmp.ne.s32.totalorder %s325, %s328
      %p334 = scmp.eq.s32.totalorder %s21, 0
      %p335 = por %p333, %p334
      %p336 = scmp.ne.s32.totalorder %s325, %s328
      %p337 = scmp.eq.s32.totalorder %s26, 3
      %p338 = por %p336, %p337
      %p339 = scmp.ne.s32.totalorder %s328, %s329
      %p340 = scmp.eq.s32.totalorder %s26, 0
      %p341 = por %p339, %p340
      %p342 = scmp.ne.s32.totalorder %s328, %s329
      %p343 = scmp.eq.s32.totalorder %s27, 3
      %p344 = por %p342, %p343
      %p346 = scmp.ne.s32.totalorder %s329, %s345
      %p347 = scmp.eq.s32.totalorder %s27, 0
      %p348 = por %p346, %p347
      %s349 = ssub.s32 %s28, %s40
      %p350 = scmp.eq.s32.totalorder %s349, 0
      %s352 = sadd.s32 %s351, 1
      %s353 = scalar_select %p350, %s351, %s352
      %p356 = pneg %p350
      %p357 = scmp.eq.s32.totalorder %s21, 3
      %p358 = por %p356, %p357
      %p359 = scmp.ne.s32.totalorder %s351, %s354
      %p360 = scmp.eq.s32.totalorder %s21, 0
      %p361 = por %p359, %p360
      %p362 = scmp.ne.s32.totalorder %s351, %s354
      %p363 = scmp.eq.s32.totalorder %s26, 3
      %p364 = por %p362, %p363
      %p365 = scmp.ne.s32.totalorder %s354, %s355
      %p366 = scmp.eq.s32.totalorder %s26, 0
      %p367 = por %p365, %p366
      %p368 = scmp.ne.s32.totalorder %s354, %s355
      %p369 = scmp.eq.s32.totalorder %s27, 3
      %p370 = por %p368, %p369
      %p372 = scmp.ne.s32.totalorder %s355, %s371
      %p373 = scmp.eq.s32.totalorder %s27, 0
      %p374 = por %p372, %p373
      %p375 = scmp.le.s32.totalorder 1, %s21
      %p376 = scmp.lt.s32.totalorder %s21, 5
      %p377 = pnand %p375, %p376
      %p378 = pneg %p377
      // Predicated region
      $region9: #{_seq_impl.1} parent=5 // pred_check
        _
      $region10: #{_seq_impl.1} parent=5 // pred_check_branch
        %380 = sbr.rel (%p377) target = $region12
      $region11: #{_seq_impl.1} parent=5 // pred_region
        %s381 = ssub.s32 %s21, 1
        // Predicated region
        $region13: #{_seq_impl.1} parent=11 // pred_check
          %p382 = pneg %p87
        $region14: #{_seq_impl.1} parent=11 // pred_check_branch
          %384 = sbr.rel (%p382) target = $region16
        $region15: #{_seq_impl.1} parent=11 // pred_region
          %s385 = smul.u32 4, %s30
          %p386 = scmp.lt.s32.totalorder %s385, 3
          %s387 = scalar_select %p386, %s385, 3
          %s388 = smul.addr %s387, 8
          %s389 = scalar_lea.vmem %s1, %s388
          %s390 = smul.u32 4, %s30
        $region16: #{_seq_impl.1} parent=11 // pred_fallthru
          _
        // Predicated region
        $region17: #{_seq_impl.1} parent=11 // pred_check
          %p391 = pneg %p113
        $region18: #{_seq_impl.1} parent=11 // pred_check_branch
          %393 = sbr.rel (%p391) target = $region20
        $region19: #{_seq_impl.1} parent=11 // pred_region
          %s394 = smul.u32 4, %s30
          %p395 = scmp.lt.s32.totalorder %s394, 3
          %s396 = scalar_select %p395, %s394, 3
          %s397 = smul.addr %s396, 8
          %s398 = scalar_lea.vmem %s2, %s397
          %s399 = smul.u32 4, %s30
        $region20: #{_seq_impl.1} parent=11 // pred_fallthru
          _
        // Predicated region
        $region21: #{_seq_impl.1} parent=11 // pred_check
          %p400 = pneg %p139
        $region22: #{_seq_impl.1} parent=11 // pred_check_branch
          %402 = sbr.rel (%p400) target = $region24
        $region23: #{_seq_impl.1} parent=11 // pred_region
          %s403 = smul.u32 4, %s30
          %p404 = scmp.lt.s32.totalorder %s403, 3
          %s405 = scalar_select %p404, %s403, 3
          %s406 = smul.addr %s405, 8
          %s407 = scalar_lea.vmem %s3, %s406
          %s408 = smul.u32 4, %s30
        $region24: #{_seq_impl.1} parent=11 // pred_fallthru
          _
        // Predicated region
        $region25: #{_seq_impl.1} parent=11 // pred_check
          %p409 = pneg %p160
        $region26: #{_seq_impl.1} parent=11 // pred_check_branch
          %411 = sbr.rel (%p409) target = $region28
        $region27: #{_seq_impl.1} parent=11 // pred_region
          _
        $region28: #{_seq_impl.1} parent=11 // pred_fallthru
          _
        // Predicated region
        $region29: #{_seq_impl.1} parent=11 // pred_check
          %p412 = pneg %p181
        $region30: #{_seq_impl.1} parent=11 // pred_check_branch
          %414 = sbr.rel (%p412) target = $region32
        $region31: #{_seq_impl.1} parent=11 // pred_region
          _
        $region32: #{_seq_impl.1} parent=11 // pred_fallthru
          _
      $region12: #{_seq_impl.1} parent=5 // pred_fallthru
        _
      %p415 = scmp.lt.s32.totalorder %s21, 4
      // Predicated region
      $region33: #{_seq_impl.1} parent=5 // pred_check
        %p416 = pneg %p415
      $region34: #{_seq_impl.1} parent=5 // pred_check_branch
        %418 = sbr.rel (%p416) target = $region36
      $region35: #{_seq_impl.1} parent=5 // pred_region
        // Predicated region
        $region37: #{_seq_impl.1} parent=35 // pred_check
          %p419 = pneg %p55
        $region38: #{_seq_impl.1} parent=35 // pred_check_branch
          %421 = sbr.rel (%p419) target = $region40
        $region39: #{_seq_impl.1} parent=35 // pred_region
          %s422 = smul.u32 4, %s28
          %p423 = scmp.lt.s32.totalorder %s29, 3
          %s424 = scalar_select %p423, %s29, 3
          %p425 = scmp.lt.s32.totalorder %s422, 3
          %s426 = scalar_select %p425, %s422, 3
          %s427 = smul.addr %s424, 4
          %s428 = sadd.s32 %s426, %s427
          %s429 = smul.addr %s428, 8
          %s430 = scalar_lea.vmem %s0, %s429
          %s431 = smul.u32 4, %s28
        $region40: #{_seq_impl.1} parent=35 // pred_fallthru
          _
      $region36: #{_seq_impl.1} parent=5 // pred_fallthru
        _
      %p432 = scmp.le.s32.totalorder 1, %s21
      %p433 = scmp.lt.s32.totalorder %s21, 5
      %p434 = pnand %p432, %p433
      %p435 = pneg %p434
      // Predicated region
      $region41: #{_seq_impl.1} parent=5 // pred_check
        _
      $region42: #{_seq_impl.1} parent=5 // pred_check_branch
        %437 = sbr.rel (%p434) target = $region44
      $region43: #{_seq_impl.1} parent=5 // pred_region
        %s438 = ssub.s32 %s21, 1
        %s439 = smul.u32 4, %s30
        %p440 = scmp.lt.s32.totalorder %s31, 3
        %s441 = scalar_select %p440, %s31, 3
        %p442 = scmp.lt.s32.totalorder %s439, 3
        %s443 = scalar_select %p442, %s439, 3
        %s444 = smul.addr %s441, 4
        %s445 = sadd.s32 %s443, %s444
        %s446 = smul.addr %s445, 8
        %s447 = scalar_lea.vmem %s0, %s446
        %p448 = pneg %p61
        %p449 = pneg %p58
        %s450 = smul.u32 4, %s30
        %p451 = scmp.lt.s32.totalorder %s450, 3
        %s452 = scalar_select %p451, %s450, 3
        %s453 = smul.addr %s452, 8
        %s454 = scalar_lea.vmem %s1, %s453
        %p455 = pneg %p87
        %p456 = pneg %p84
        %s457 = smul.u32 4, %s30
        %p458 = scmp.lt.s32.totalorder %s457, 3
        %s459 = scalar_select %p458, %s457, 3
        %s460 = smul.addr %s459, 8
        %s461 = scalar_lea.vmem %s2, %s460
        %p462 = pneg %p113
        %p463 = pneg %p110
        %s464 = smul.u32 4, %s30
        %p465 = scmp.lt.s32.totalorder %s464, 3
        %s466 = scalar_select %p465, %s464, 3
        %s467 = smul.addr %s466, 8
        %s468 = scalar_lea.vmem %s3, %s467
        %p469 = pneg %p139
        %p470 = pneg %p136
        %p471 = pneg %p160
        %p472 = pneg %p157
        %p473 = pneg %p181
        %p474 = pneg %p178
        %p475 = pneg %p209
        %p476 = pneg %p206
        %s477 = smul.u32 4, %s30
        %p478 = scmp.lt.s32.totalorder %s31, 3
        %s479 = scalar_select %p478, %s31, 3
        %p480 = scmp.lt.s32.totalorder %s477, 3
        %s481 = scalar_select %p480, %s477, 3
        %s482 = smul.addr %s479, 4
        %s483 = sadd.s32 %s481, %s482
        %s484 = smul.addr %s483, 8
        %s485 = scalar_lea.vmem %s6, %s484
        %p486 = pneg %p237
        %p487 = pneg %p234
        %s488 = smul.u32 4, %s30
        %p489 = scmp.lt.s32.totalorder %s31, 3
        %s490 = scalar_select %p489, %s31, 3
        %p491 = scmp.lt.s32.totalorder %s488, 3
        %s492 = scalar_select %p491, %s488, 3
        %s493 = smul.addr %s490, 4
        %s494 = sadd.s32 %s492, %s493
        %s495 = smul.addr %s494, 8
        %s496 = scalar_lea.vmem %s7, %s495
        %p497 = pneg %p263
        %p498 = pneg %p260
        %s499 = smul.u32 4, %s30
        %p500 = scmp.lt.s32.totalorder %s499, 3
        %s501 = scalar_select %p500, %s499, 3
        %s502 = smul.addr %s501, 8
        %s503 = scalar_lea.vmem %s8, %s502
        %p504 = pneg %p289
        %p505 = pneg %p286
        %s506 = smul.u32 4, %s30
        %p507 = scmp.lt.s32.totalorder %s506, 3
        %s508 = scalar_select %p507, %s506, 3
        %s509 = smul.addr %s508, 8
        %s510 = scalar_lea.vmem %s9, %s509
        %p511 = pneg %p315
        %p512 = pneg %p312
        %s513 = smul.u32 4, %s30
        %p514 = scmp.lt.s32.totalorder %s513, 3
        %s515 = scalar_select %p514, %s513, 3
        %s516 = smul.addr %s515, 8
        %s517 = scalar_lea.vmem %s10, %s516
        %p518 = pneg %p341
        %p519 = pneg %p338
        %p520 = pneg %p367
        %p521 = pneg %p364
        %s522 = smul.u32 4, %s30
        %p523 = scmp.lt.s32.totalorder %s31, 3
        %s524 = scalar_select %p523, %s31, 3
        %p525 = scmp.lt.s32.totalorder %s522, 3
        %s526 = scalar_select %p525, %s522, 3
        %s527 = smul.addr %s524, 4
        %s528 = sadd.s32 %s526, %s527
        %s529 = smul.addr %s528, 8
        %s530 = scalar_lea.vmem %s0, %s529
        %s531 = smul.u32 4, %s30
        %s532 = smul.u32 4, %s30
        %p533 = scmp.lt.s32.totalorder %s532, 3
        %s534 = scalar_select %p533, %s532, 3
        %s535 = smul.addr %s534, 8
        %s536 = scalar_lea.vmem %s1, %s535
        %s537 = smul.u32 4, %s30
        %s538 = smul.u32 4, %s30
        %p539 = scmp.lt.s32.totalorder %s538, 3
        %s540 = scalar_select %p539, %s538, 3
        %s541 = smul.addr %s540, 8
        %s542 = scalar_lea.vmem %s2, %s541
        %s543 = smul.u32 4, %s30
        %s544 = smul.u32 4, %s30
        %p545 = scmp.lt.s32.totalorder %s544, 3
        %s546 = scalar_select %p545, %s544, 3
        %s547 = smul.addr %s546, 8
        %s548 = scalar_lea.vmem %s3, %s547
        %s549 = smul.u32 4, %s30
        %s550 = smul.u32 4, %s30
        %p551 = scmp.lt.s32.totalorder %s31, 3
        %s552 = scalar_select %p551, %s31, 3
        %p553 = scmp.lt.s32.totalorder %s550, 3
        %s554 = scalar_select %p553, %s550, 3
        %s555 = smul.addr %s552, 4
        %s556 = sadd.s32 %s554, %s555
        %s557 = smul.addr %s556, 8
        %s558 = scalar_lea.vmem %s6, %s557
        %s559 = smul.u32 4, %s30
        %s560 = smul.u32 4, %s30
        %p561 = scmp.lt.s32.totalorder %s31, 3
        %s562 = scalar_select %p561, %s31, 3
        %p563 = scmp.lt.s32.totalorder %s560, 3
        %s564 = scalar_select %p563, %s560, 3
        %s565 = smul.addr %s562, 4
        %s566 = sadd.s32 %s564, %s565
        %s567 = smul.addr %s566, 8
        %s568 = scalar_lea.vmem %s7, %s567
        %s569 = smul.u32 4, %s30
        %s570 = smul.u32 4, %s30
        %p571 = scmp.lt.s32.totalorder %s570, 3
        %s572 = scalar_select %p571, %s570, 3
        %s573 = smul.addr %s572, 8
        %s574 = scalar_lea.vmem %s8, %s573
        %s575 = smul.u32 4, %s30
        %s576 = smul.u32 4, %s30
        %p577 = scmp.lt.s32.totalorder %s576, 3
        %s578 = scalar_select %p577, %s576, 3
        %s579 = smul.addr %s578, 8
        %s580 = scalar_lea.vmem %s9, %s579
        %s581 = smul.u32 4, %s30
        %s582 = smul.u32 4, %s30
        %p583 = scmp.lt.s32.totalorder %s582, 3
        %s584 = scalar_select %p583, %s582, 3
        %s585 = smul.addr %s584, 8
        %s586 = scalar_lea.vmem %s10, %s585
        %s587 = smul.u32 4, %s30
        %s588 = smul.u32 4, %s30
        %s589 = smul.u32 4, %s30
        %p590 = scmp.eq.s32.totalorder %s31, 0
        // Predicated region
        $region45: #{_seq_impl.1} parent=43 // pred_check
          %p591 = pneg %p590
        $region46: #{_seq_impl.1} parent=43 // pred_check_branch
          %593 = sbr.rel (%p591) target = $region48
        $region47: #{_seq_impl.1} parent=43 // pred_region
          %v594 = vld [vmem:[%s536] sm:$0xff]
          %v595 = vld [vmem:[%s536 + $0x8] sm:$0xff]
          %v596 = vld [vmem:[%s536 + $0x10] sm:$0xff]
          %v597 = vld [vmem:[%s536 + $0x18] sm:$0xff]
          %598 = vst [vmem:[%s574] sm:$0xff] %v594
          %599 = vst [vmem:[%s574 + $0x8] sm:$0xff] %v595
          %600 = vst [vmem:[%s574 + $0x10] sm:$0xff] %v596
          %601 = vst [vmem:[%s574 + $0x18] sm:$0xff] %v597
          %v602 = vld [vmem:[%s542] sm:$0xff]
          %v603 = vld [vmem:[%s542 + $0x8] sm:$0xff]
          %v604 = vld [vmem:[%s542 + $0x10] sm:$0xff]
          %v605 = vld [vmem:[%s542 + $0x18] sm:$0xff]
          %606 = vst [vmem:[%s580] sm:$0xff] %v602
          %607 = vst [vmem:[%s580 + $0x8] sm:$0xff] %v603
          %608 = vst [vmem:[%s580 + $0x10] sm:$0xff] %v604
          %609 = vst [vmem:[%s580 + $0x18] sm:$0xff] %v605
          %v610 = vld [vmem:[%s548] sm:$0xff]
          %v611 = vld [vmem:[%s548 + $0x8] sm:$0xff]
          %v612 = vld [vmem:[%s548 + $0x10] sm:$0xff]
          %v613 = vld [vmem:[%s548 + $0x18] sm:$0xff]
          %614 = vst [vmem:[%s586] sm:$0xff] %v610
          %615 = vst [vmem:[%s586 + $0x8] sm:$0xff] %v611
          %616 = vst [vmem:[%s586 + $0x10] sm:$0xff] %v612
          %617 = vst [vmem:[%s586 + $0x18] sm:$0xff] %v613
        $region48: #{_seq_impl.1} parent=43 // pred_fallthru
          _
        %v618 = vld [vmem:[%s530] sm:$0xff]
        %v619 = vld [vmem:[%s530 + $0x8] sm:$0xff]
        %v620 = vld [vmem:[%s530 + $0x10] sm:$0xff]
        %v621 = vld [vmem:[%s530 + $0x18] sm:$0xff]
        %v622 = vld [vmem:[%s580] sm:$0xff]
        %v623 = vld [vmem:[%s580 + $0x8] sm:$0xff]
        %v624 = vld [vmem:[%s580 + $0x10] sm:$0xff]
        %v625 = vld [vmem:[%s580 + $0x18] sm:$0xff]
        %v626 = vld [vmem:[%s574] sm:$0xff]
        %v627 = vld [vmem:[%s574 + $0x8] sm:$0xff]
        %v628 = vld [vmem:[%s574 + $0x10] sm:$0xff]
        %v629 = vld [vmem:[%s574 + $0x18] sm:$0xff]
        %v630 = vmul.f32 %v626, 0.9
        %v631 = vmul.f32 %v627, 0.9
        %v632 = vmul.f32 %v628, 0.9
        %v633 = vmul.f32 %v629, 0.9
        %v634 = vmul.f32 %v622, 10.0
        %v635 = vmul.f32 %v623, 10.0
        %v636 = vmul.f32 %v624, 10.0
        %v637 = vmul.f32 %v625, 10.0
        %v638 = vadd.f32 %v630, %v634
        %v639 = vadd.f32 %v631, %v635
        %v640 = vadd.f32 %v632, %v636
        %v641 = vadd.f32 %v633, %v637
        %642 = vst [vmem:[%s574] sm:$0xff] %v638
        %643 = vst [vmem:[%s574 + $0x8] sm:$0xff] %v639
        %644 = vst [vmem:[%s574 + $0x10] sm:$0xff] %v640
        %645 = vst [vmem:[%s574 + $0x18] sm:$0xff] %v641
        %v646 = vmul.f32 %v622, 0.8
        %v647 = vmul.f32 %v623, 0.8
        %v648 = vmul.f32 %v624, 0.8
        %v649 = vmul.f32 %v625, 0.8
        %v650 = vmul.f32 %v618, 5.0
        %v651 = vmul.f32 %v619, 5.0
        %v652 = vmul.f32 %v620, 5.0
        %v653 = vmul.f32 %v621, 5.0
        %v654 = vadd.f32 %v646, %v650
        %v655 = vadd.f32 %v647, %v651
        %v656 = vadd.f32 %v648, %v652
        %v657 = vadd.f32 %v649, %v653
        %658 = vst [vmem:[%s580] sm:$0xff] %v654
        %659 = vst [vmem:[%s580 + $0x8] sm:$0xff] %v655
        %660 = vst [vmem:[%s580 + $0x10] sm:$0xff] %v656
        %661 = vst [vmem:[%s580 + $0x18] sm:$0xff] %v657
        %v662 = vrot.slane %v638, 1
        %v663 = vrot.slane %v639, 1
        %v664 = vrot.slane %v640, 1
        %v665 = vrot.slane %v641, 1
        %v666 = vlaneseq
        %v667 = vshrl.u32 %v666, 7
        %vm668 = vcmp.lt.s32.totalorder %v667, 7
        %v669 = vsel %vm668, %v664, %v665
        %v670 = vsel %vm668, %v663, %v664
        %v671 = vsel %vm668, %v662, %v663
        %v672 = vsel %vm668, %v665, %v662
        %v673 = vrot.slane %v638, 2
        %v674 = vrot.slane %v639, 2
        %v675 = vrot.slane %v640, 2
        %v676 = vrot.slane %v641, 2
        %vm677 = vcmp.lt.s32.totalorder %v667, 6
        %v678 = vsel %vm677, %v675, %v676
        %v679 = vsel %vm677, %v674, %v675
        %v680 = vsel %vm677, %v673, %v674
        %v681 = vsel %vm677, %v676, %v673
        %v682 = vld [vmem:[%s4] sm:$0xff]
        %v683 = vld [vmem:[%s4 + $0x8] sm:$0xff]
        %v684 = vld [vmem:[%s4 + $0x10] sm:$0xff]
        %v685 = vld [vmem:[%s4 + $0x18] sm:$0xff]
        %v686 = vld [vmem:[%s4 + $0x20] sm:$0xff]
        %v687 = vld [vmem:[%s4 + $0x28] sm:$0xff]
        %v688 = vld [vmem:[%s4 + $0x30] sm:$0xff]
        %v689 = vld [vmem:[%s4 + $0x38] sm:$0xff]
        %v690 = vld [vmem:[%s4 + $0x40] sm:$0xff]
        %v691 = vld [vmem:[%s4 + $0x48] sm:$0xff]
        %v692 = vld [vmem:[%s4 + $0x50] sm:$0xff]
        %v693 = vld [vmem:[%s4 + $0x58] sm:$0xff]
        %v694 = vld [vmem:[%s4 + $0x60] sm:$0xff]
        %v695 = vld [vmem:[%s4 + $0x68] sm:$0xff]
        %v696 = vld [vmem:[%s4 + $0x70] sm:$0xff]
        %v697 = vld [vmem:[%s4 + $0x78] sm:$0xff]
        %v698 = vld [vmem:[%s4 + $0x80] sm:$0xff]
        %v699 = vld [vmem:[%s4 + $0x88] sm:$0xff]
        %v700 = vld [vmem:[%s4 + $0x90] sm:$0xff]
        %v701 = vld [vmem:[%s4 + $0x98] sm:$0xff]
        %v702 = vld [vmem:[%s4 + $0xa0] sm:$0xff]
        %v703 = vld [vmem:[%s4 + $0xa8] sm:$0xff]
        %v704 = vld [vmem:[%s4 + $0xb0] sm:$0xff]
        %v705 = vld [vmem:[%s4 + $0xb8] sm:$0xff]
        %v706 = vld [vmem:[%s4 + $0xc0] sm:$0xff]
        %v707 = vld [vmem:[%s4 + $0xc8] sm:$0xff]
        %v708 = vld [vmem:[%s4 + $0xd0] sm:$0xff]
        %v709 = vld [vmem:[%s4 + $0xd8] sm:$0xff]
        %v710 = vld [vmem:[%s4 + $0xe0] sm:$0xff]
        %v711 = vld [vmem:[%s4 + $0xe8] sm:$0xff]
        %v712 = vld [vmem:[%s4 + $0xf0] sm:$0xff]
        %v713 = vld [vmem:[%s4 + $0xf8] sm:$0xff]
        %v714 = vld [vmem:[%s4 + $0x100] sm:$0xff]
        %v715 = vld [vmem:[%s4 + $0x108] sm:$0xff]
        %v716 = vld [vmem:[%s4 + $0x110] sm:$0xff]
        %v717 = vld [vmem:[%s4 + $0x118] sm:$0xff]
        %v718 = vld [vmem:[%s4 + $0x120] sm:$0xff]
        %v719 = vld [vmem:[%s4 + $0x128] sm:$0xff]
        %v720 = vld [vmem:[%s4 + $0x130] sm:$0xff]
        %v721 = vld [vmem:[%s4 + $0x138] sm:$0xff]
        %v722 = vld [vmem:[%s4 + $0x140] sm:$0xff]
        %v723 = vld [vmem:[%s4 + $0x148] sm:$0xff]
        %v724 = vld [vmem:[%s4 + $0x150] sm:$0xff]
        %v725 = vld [vmem:[%s4 + $0x158] sm:$0xff]
        %v726 = vld [vmem:[%s4 + $0x160] sm:$0xff]
        %v727 = vld [vmem:[%s4 + $0x168] sm:$0xff]
        %v728 = vld [vmem:[%s4 + $0x170] sm:$0xff]
        %v729 = vld [vmem:[%s4 + $0x178] sm:$0xff]
        %v730 = vld [vmem:[%s5] sm:$0x1]
        %v732 = vperm.slane %v730, 0
        %734 = vmatpush.msra.mxu0 %v697
        %735 = vmatpush.msra.mxu0 %v696
        %736 = vmatpush.msra.mxu0 %v695
        %737 = vmatpush.msra.mxu0 %v694
        %738 = vmatpush.msra.mxu0 %v693
        %739 = vmatpush.msra.mxu0 %v692
        %740 = vmatpush.msra.mxu0 %v691
        %741 = vmatpush.msra.mxu0 %v690
        %742 = vmatpush.msra.mxu0 %v689
        %743 = vmatpush.msra.mxu0 %v688
        %744 = vmatpush.msra.mxu0 %v687
        %745 = vmatpush.msra.mxu0 %v686
        %746 = vmatpush.msra.mxu0 %v685
        %747 = vmatpush.msra.mxu0 %v684
        %748 = vmatpush.msra.mxu0 %v683
        %749 = vmatpush.msra.mxu0 %v682
        %750 = vmatmul.f32.gmra.mxu0 %v638
        %v751 = vpop.f32.mrf.mxu0
        %v752 = vadd.f32 %v732, %v751
        %753 = vmatmul.f32.gmra.mxu0 %v639
        %v754 = vpop.f32.mrf.mxu0
        %v755 = vadd.f32 %v732, %v754
        %756 = vmatmul.f32.gmra.mxu0 %v640
        %v757 = vpop.f32.mrf.mxu0
        %v758 = vadd.f32 %v732, %v757
        %759 = vmatmul.f32.gmra.mxu0 %v641
        %v760 = vpop.f32.mrf.mxu0
        %v761 = vadd.f32 %v732, %v760
        %762 = vdwg.mxu0
        %763 = vmatpush.msra.mxu0 %v713
        %764 = vmatpush.msra.mxu0 %v712
        %765 = vmatpush.msra.mxu0 %v711
        %766 = vmatpush.msra.mxu0 %v710
        %767 = vmatpush.msra.mxu0 %v709
        %768 = vmatpush.msra.mxu0 %v708
        %769 = vmatpush.msra.mxu0 %v707
        %770 = vmatpush.msra.mxu0 %v706
        %771 = vmatpush.msra.mxu0 %v705
        %772 = vmatpush.msra.mxu0 %v704
        %773 = vmatpush.msra.mxu0 %v703
        %774 = vmatpush.msra.mxu0 %v702
        %775 = vmatpush.msra.mxu0 %v701
        %776 = vmatpush.msra.mxu0 %v700
        %777 = vmatpush.msra.mxu0 %v699
        %778 = vmatpush.msra.mxu0 %v698
        %779 = vmatmul.f32.gmra.mxu0 %v671
        %v780 = vpop.f32.mrf.mxu0
        %v781 = vadd.f32 %v752, %v780
        %782 = vmatmul.f32.gmra.mxu0 %v670
        %v783 = vpop.f32.mrf.mxu0
        %v784 = vadd.f32 %v755, %v783
        %785 = vmatmul.f32.gmra.mxu0 %v669
        %v786 = vpop.f32.mrf.mxu0
        %v787 = vadd.f32 %v758, %v786
        %788 = vmatmul.f32.gmra.mxu0 %v672
        %v789 = vpop.f32.mrf.mxu0
        %v790 = vadd.f32 %v761, %v789
        %791 = vdwg.mxu0
        %792 = vmatpush.msra.mxu0 %v729
        %793 = vmatpush.msra.mxu0 %v728
        %794 = vmatpush.msra.mxu0 %v727
        %795 = vmatpush.msra.mxu0 %v726
        %796 = vmatpush.msra.mxu0 %v725
        %797 = vmatpush.msra.mxu0 %v724
        %798 = vmatpush.msra.mxu0 %v723
        %799 = vmatpush.msra.mxu0 %v722
        %800 = vmatpush.msra.mxu0 %v721
        %801 = vmatpush.msra.mxu0 %v720
        %802 = vmatpush.msra.mxu0 %v719
        %803 = vmatpush.msra.mxu0 %v718
        %804 = vmatpush.msra.mxu0 %v717
        %805 = vmatpush.msra.mxu0 %v716
        %806 = vmatpush.msra.mxu0 %v715
        %807 = vmatpush.msra.mxu0 %v714
        %808 = vmatmul.f32.gmra.mxu0 %v680
        %v809 = vpop.f32.mrf.mxu0
        %v810 = vadd.f32 %v781, %v809
        %811 = vmatmul.f32.gmra.mxu0 %v679
        %v812 = vpop.f32.mrf.mxu0
        %v813 = vadd.f32 %v784, %v812
        %814 = vmatmul.f32.gmra.mxu0 %v678
        %v815 = vpop.f32.mrf.mxu0
        %v816 = vadd.f32 %v787, %v815
        %817 = vmatmul.f32.gmra.mxu0 %v681
        %v818 = vpop.f32.mrf.mxu0
        %v819 = vadd.f32 %v790, %v818
        %820 = vdwg.mxu0
        %v821 = vld [vmem:[%s586] sm:$0xff]
        %v822 = vld [vmem:[%s586 + $0x8] sm:$0xff]
        %v823 = vld [vmem:[%s586 + $0x10] sm:$0xff]
        %v824 = vld [vmem:[%s586 + $0x18] sm:$0xff]
        %v825 = vmul.f32 %v821, 0.6
        %v826 = vmul.f32 %v822, 0.6
        %v827 = vmul.f32 %v823, 0.6
        %v828 = vmul.f32 %v824, 0.6
        %v829 = vsub.f32 %v810, %v825
        %v830 = vsub.f32 %v813, %v826
        %v831 = vsub.f32 %v816, %v827
        %v832 = vsub.f32 %v819, %v828
        %vm833 = vcmp.ge.f32.partialorder %v829, 1.0
        %vm834 = vcmp.ge.f32.partialorder %v830, 1.0
        %vm835 = vcmp.ge.f32.partialorder %v831, 1.0
        %vm836 = vcmp.ge.f32.partialorder %v832, 1.0
        %v837 = vsel %vm833, 1, 0
        %v838 = vsel %vm834, 1, 0
        %v839 = vsel %vm835, 1, 0
        %v840 = vsel %vm836, 1, 0
        %v841 = vcvt.s32.f32 %v837
        %v842 = vcvt.s32.f32 %v838
        %v843 = vcvt.s32.f32 %v839
        %v844 = vcvt.s32.f32 %v840
        %v845 = vadd.f32 %v825, %v841
        %v846 = vadd.f32 %v826, %v842
        %v847 = vadd.f32 %v827, %v843
        %v848 = vadd.f32 %v828, %v844
        %849 = vst [vmem:[%s586] sm:$0xff] %v845
        %850 = vst [vmem:[%s586 + $0x8] sm:$0xff] %v846
        %851 = vst [vmem:[%s586 + $0x10] sm:$0xff] %v847
        %852 = vst [vmem:[%s586 + $0x18] sm:$0xff] %v848
        %853 = vrot.lane.b32.xlu0 %v829, 120
        %v854 = vpop.permute.xlu0 %853
        %855 = vrot.lane.b32.xlu0 %v830, 120
        %v856 = vpop.permute.xlu0 %855
        %857 = vrot.lane.b32.xlu0 %v831, 120
        %v858 = vpop.permute.xlu0 %857
        %859 = vrot.lane.b32.xlu0 %v832, 120
        %v860 = vpop.permute.xlu0 %859
        %v861 = vmax.f32 %v829, %v854
        %v862 = vmax.f32 %v830, %v856
        %v863 = vmax.f32 %v831, %v858
        %v864 = vmax.f32 %v832, %v860
        %v865 = vrot.slane %v861, 1
        %v866 = vrot.slane %v862, 1
        %v867 = vrot.slane %v863, 1
        %v868 = vrot.slane %v864, 1
        %v869 = vsel %vm668, %v867, %v868
        %v870 = vsel %vm668, %v866, %v867
        %v871 = vsel %vm668, %v865, %v866
        %v872 = vsel %vm668, %v868, %v865
        %v873 = vmax.f32 %v861, %v871
        %v874 = vmax.f32 %v862, %v870
        %v875 = vmax.f32 %v863, %v869
        %v876 = vmax.f32 %v864, %v872
        %vm877 = vcmp.ge.f32.partialorder %v873, 1.0
        %vm878 = vcmp.ge.f32.partialorder %v874, 1.0
        %vm879 = vcmp.ge.f32.partialorder %v875, 1.0
        %vm880 = vcmp.ge.f32.partialorder %v876, 1.0
        %v881 = vsel %vm877, 1, 0
        %v882 = vsel %vm878, 1, 0
        %v883 = vsel %vm879, 1, 0
        %v884 = vsel %vm880, 1, 0
        %v885 = vcvt.s32.f32 %v881
        %v886 = vcvt.s32.f32 %v882
        %v887 = vcvt.s32.f32 %v883
        %v888 = vcvt.s32.f32 %v884
        %889 = vst [vmem:[%s558] sm:$0xff] %v885
        %890 = vst [vmem:[%s558 + $0x8] sm:$0xff] %v886
        %891 = vst [vmem:[%s558 + $0x10] sm:$0xff] %v887
        %892 = vst [vmem:[%s558 + $0x18] sm:$0xff] %v888
        %v893 = vxor.u32 %v873, 2147483648
        %v894 = vxor.u32 %v874, 2147483648
        %v895 = vxor.u32 %v875, 2147483648
        %v896 = vxor.u32 %v876, 2147483648
        %v897 = vmul.f32 %v893, 1.442695
        %v898 = vpow.pop %v897
        %v899 = vmul.f32 %v894, 1.442695
        %v900 = vpow.pop %v899
        %v901 = vmul.f32 %v895, 1.442695
        %v902 = vpow.pop %v901
        %v903 = vmul.f32 %v896, 1.442695
        %v904 = vpow.pop %v903
        %v905 = vadd.f32 %v898, 1.0
        %v906 = vadd.f32 %v900, 1.0
        %v907 = vadd.f32 %v902, 1.0
        %v908 = vadd.f32 %v904, 1.0
        %v909 = vrcp.pop %v905
        %v910 = vmul.f32 %v905, %v909
        %v911 = vsub.f32 1.0, %v910
        %v912 = vmul.f32 %v909, %v911
        %v913 = vadd.f32 %v909, %v912
        %vm914 = vweird.f32 %v905
        %vm915 = vweird.f32 %v909
        %vm916 = vmor %vm914, %vm915
        %v917 = vsel %vm916, %v909, %v913
        %v918 = vand.u32 2147483647, %v905
        %vm919 = vcmp.eq.f32.partialorder %v918, 8.507059e+37
        %v920 = vand.u32 %v905, 2147483648
        %v921 = vor.u32 1.1754944e-38, %v920
        %v922 = vsel %vm919, %v921, %v917
        %v923 = vmul.f32 1.0, %v922
        %v924 = vrcp.pop %v906
        %v925 = vmul.f32 %v906, %v924
        %v926 = vsub.f32 1.0, %v925
        %v927 = vmul.f32 %v924, %v926
        %v928 = vadd.f32 %v924, %v927
        %vm929 = vweird.f32 %v906
        %vm930 = vweird.f32 %v924
        %vm931 = vmor %vm929, %vm930
        %v932 = vsel %vm931, %v924, %v928
        %v933 = vand.u32 2147483647, %v906
        %vm934 = vcmp.eq.f32.partialorder %v933, 8.507059e+37
        %v935 = vand.u32 %v906, 2147483648
        %v936 = vor.u32 1.1754944e-38, %v935
        %v937 = vsel %vm934, %v936, %v932
        %v938 = vmul.f32 1.0, %v937
        %v939 = vrcp.pop %v907
        %v940 = vmul.f32 %v907, %v939
        %v941 = vsub.f32 1.0, %v940
        %v942 = vmul.f32 %v939, %v941
        %v943 = vadd.f32 %v939, %v942
        %vm944 = vweird.f32 %v907
        %vm945 = vweird.f32 %v939
        %vm946 = vmor %vm944, %vm945
        %v947 = vsel %vm946, %v939, %v943
        %v948 = vand.u32 2147483647, %v907
        %vm949 = vcmp.eq.f32.partialorder %v948, 8.507059e+37
        %v950 = vand.u32 %v907, 2147483648
        %v951 = vor.u32 1.1754944e-38, %v950
        %v952 = vsel %vm949, %v951, %v947
        %v953 = vmul.f32 1.0, %v952
        %v954 = vrcp.pop %v908
        %v955 = vmul.f32 %v908, %v954
        %v956 = vsub.f32 1.0, %v955
        %v957 = vmul.f32 %v954, %v956
        %v958 = vadd.f32 %v954, %v957
        %vm959 = vweird.f32 %v908
        %vm960 = vweird.f32 %v954
        %vm961 = vmor %vm959, %vm960
        %v962 = vsel %vm961, %v954, %v958
        %v963 = vand.u32 2147483647, %v908
        %vm964 = vcmp.eq.f32.partialorder %v963, 8.507059e+37
        %v965 = vand.u32 %v908, 2147483648
        %v966 = vor.u32 1.1754944e-38, %v965
        %v967 = vsel %vm964, %v966, %v962
        %v968 = vmul.f32 1.0, %v967
        %969 = vst [vmem:[%s568] sm:$0xff] %v923
        %970 = vst [vmem:[%s568 + $0x8] sm:$0xff] %v938
        %971 = vst [vmem:[%s568 + $0x10] sm:$0xff] %v953
        %972 = vst [vmem:[%s568 + $0x18] sm:$0xff] %v968
        %p973 = scmp.eq.s32.totalorder %s31, 3
        // Predicated region
        $region49: #{_seq_impl.1} parent=43 // pred_check
          %p974 = pneg %p973
        $region50: #{_seq_impl.1} parent=43 // pred_check_branch
          %976 = sbr.rel (%p974) target = $region52
        $region51: #{_seq_impl.1} parent=43 // pred_region
          %977 = vst [vmem:[#allocation2] sm:$0xff] %v841
          %978 = vst [vmem:[#allocation2 + $0x8] sm:$0xff] %v842
          %979 = vst [vmem:[#allocation2 + $0x10] sm:$0xff] %v843
          %980 = vst [vmem:[#allocation2 + $0x18] sm:$0xff] %v844
          %981 = vst [vmem:[#allocation4] sm:$0xff] %v829
          %982 = vst [vmem:[#allocation4 + $0x8] sm:$0xff] %v830
          %983 = vst [vmem:[#allocation4 + $0x10] sm:$0xff] %v831
          %984 = vst [vmem:[#allocation4 + $0x18] sm:$0xff] %v832
        $region52: #{_seq_impl.1} parent=43 // pred_fallthru
          _
        %s985 = smul.u32 4, %s30
        %p986 = scmp.lt.s32.totalorder %s31, 3
        %s987 = scalar_select %p986, %s31, 3
        %p988 = scmp.lt.s32.totalorder %s985, 3
        %s989 = scalar_select %p988, %s985, 3
        %s990 = smul.addr %s987, 4
        %s991 = sadd.s32 %s989, %s990
        %s992 = smul.addr %s991, 8
        %s993 = scalar_lea.vmem %s6, %s992
        %s994 = smul.u32 4, %s30
        %p995 = scmp.lt.s32.totalorder %s31, 3
        %s996 = scalar_select %p995, %s31, 3
        %p997 = scmp.lt.s32.totalorder %s994, 3
        %s998 = scalar_select %p997, %s994, 3
        %s999 = smul.addr %s996, 4
        %s1000 = sadd.s32 %s998, %s999
        %s1001 = smul.addr %s1000, 8
        %s1002 = scalar_lea.vmem %s7, %s1001
        %s1003 = smul.u32 4, %s30
        %p1004 = scmp.lt.s32.totalorder %s1003, 3
        %s1005 = scalar_select %p1004, %s1003, 3
        %s1006 = smul.addr %s1005, 8
        %s1007 = scalar_lea.vmem %s8, %s1006
        %s1008 = smul.u32 4, %s30
        %p1009 = scmp.lt.s32.totalorder %s1008, 3
        %s1010 = scalar_select %p1009, %s1008, 3
        %s1011 = smul.addr %s1010, 8
        %s1012 = scalar_lea.vmem %s9, %s1011
        %s1013 = smul.u32 4, %s30
        %p1014 = scmp.lt.s32.totalorder %s1013, 3
        %s1015 = scalar_select %p1014, %s1013, 3
        %s1016 = smul.addr %s1015, 8
        %s1017 = scalar_lea.vmem %s10, %s1016
        // Predicated region
        $region53: #{_seq_impl.1} parent=43 // pred_check
          %p1018 = pneg %p206
        $region54: #{_seq_impl.1} parent=43 // pred_check_branch
          %1020 = sbr.rel (%p1018) target = $region56
        $region55: #{_seq_impl.1} parent=43 // pred_region
          %s1021 = smul.u32 4, %s30
        $region56: #{_seq_impl.1} parent=43 // pred_fallthru
          _
        // Predicated region
        $region57: #{_seq_impl.1} parent=43 // pred_check
          %p1022 = pneg %p234
        $region58: #{_seq_impl.1} parent=43 // pred_check_branch
          %1024 = sbr.rel (%p1022) target = $region60
        $region59: #{_seq_impl.1} parent=43 // pred_region
          %s1025 = smul.u32 4, %s30
        $region60: #{_seq_impl.1} parent=43 // pred_fallthru
          _
        // Predicated region
        $region61: #{_seq_impl.1} parent=43 // pred_check
          %p1026 = pneg %p260
        $region62: #{_seq_impl.1} parent=43 // pred_check_branch
          %1028 = sbr.rel (%p1026) target = $region64
        $region63: #{_seq_impl.1} parent=43 // pred_region
          %s1029 = smul.u32 4, %s30
        $region64: #{_seq_impl.1} parent=43 // pred_fallthru
          _
        // Predicated region
        $region65: #{_seq_impl.1} parent=43 // pred_check
          %p1030 = pneg %p286
        $region66: #{_seq_impl.1} parent=43 // pred_check_branch
          %1032 = sbr.rel (%p1030) target = $region68
        $region67: #{_seq_impl.1} parent=43 // pred_region
          %s1033 = smul.u32 4, %s30
        $region68: #{_seq_impl.1} parent=43 // pred_fallthru
          _
        // Predicated region
        $region69: #{_seq_impl.1} parent=43 // pred_check
          %p1034 = pneg %p312
        $region70: #{_seq_impl.1} parent=43 // pred_check_branch
          %1036 = sbr.rel (%p1034) target = $region72
        $region71: #{_seq_impl.1} parent=43 // pred_region
          %s1037 = smul.u32 4, %s30
        $region72: #{_seq_impl.1} parent=43 // pred_fallthru
          _
        // Predicated region
        $region73: #{_seq_impl.1} parent=43 // pred_check
          %p1038 = pneg %p338
        $region74: #{_seq_impl.1} parent=43 // pred_check_branch
          %1040 = sbr.rel (%p1038) target = $region76
        $region75: #{_seq_impl.1} parent=43 // pred_region
          %s1041 = smul.u32 4, %s30
          %1043 = vsyncadd [#allocation3], 0
          %s1044 = smul.addr %s1041, 8
          %s1045 = scalar_lea.hbm %s11, %s1044
          %s1046 = sshll.u32 [#allocation2], 4
          %s1047 = int_to_ptr.vmem [resolvable:$true] %s1046
          %s1048 = sshll.u32 %s1045, 4
          %s1049 = int_to_ptr.hbm [resolvable:$true] %s1048
          %1054 = dma.vmem_to_hbm [thread:$0]  %s1047, 512, %s1049, [#allocation3], 128, 128, 8
        $region76: #{_seq_impl.1} parent=43 // pred_fallthru
          _
        // Predicated region
        $region77: #{_seq_impl.1} parent=43 // pred_check
          %p1055 = pneg %p364
        $region78: #{_seq_impl.1} parent=43 // pred_check_branch
          %1057 = sbr.rel (%p1055) target = $region80
        $region79: #{_seq_impl.1} parent=43 // pred_region
          %s1058 = smul.u32 4, %s30
          %1060 = vsyncadd [#allocation5], 0
          %s1061 = smul.addr %s1058, 8
          %s1062 = scalar_lea.hbm %s12, %s1061
          %s1063 = sshll.u32 [#allocation4], 4
          %s1064 = int_to_ptr.vmem [resolvable:$true] %s1063
          %s1065 = sshll.u32 %s1062, 4
          %s1066 = int_to_ptr.hbm [resolvable:$true] %s1065
          %1071 = dma.vmem_to_hbm [thread:$0]  %s1064, 512, %s1066, [#allocation5], 128, 128, 8
        $region80: #{_seq_impl.1} parent=43 // pred_fallthru
          _
        // Predicated region
        $region81: #{_seq_impl.1} parent=43 // pred_check
          %p1072 = pneg %p260
        $region82: #{_seq_impl.1} parent=43 // pred_check_branch
          %1074 = sbr.rel (%p1072) target = $region84
        $region83: #{_seq_impl.1} parent=43 // pred_region
          %s1075 = smul.u32 4, %s30
          %p1076 = scmp.lt.s32.totalorder %s1075, 3
          %s1077 = scalar_select %p1076, %s1075, 3
          %s1078 = smul.addr %s1077, 8
          %s1079 = scalar_lea.vmem %s8, %s1078
        $region84: #{_seq_impl.1} parent=43 // pred_fallthru
          _
        // Predicated region
        $region85: #{_seq_impl.1} parent=43 // pred_check
          %p1080 = pneg %p286
        $region86: #{_seq_impl.1} parent=43 // pred_check_branch
          %1082 = sbr.rel (%p1080) target = $region88
        $region87: #{_seq_impl.1} parent=43 // pred_region
          %s1083 = smul.u32 4, %s30
          %p1084 = scmp.lt.s32.totalorder %s1083, 3
          %s1085 = scalar_select %p1084, %s1083, 3
          %s1086 = smul.addr %s1085, 8
          %s1087 = scalar_lea.vmem %s9, %s1086
        $region88: #{_seq_impl.1} parent=43 // pred_fallthru
          _
        // Predicated region
        $region89: #{_seq_impl.1} parent=43 // pred_check
          %p1088 = pneg %p312
        $region90: #{_seq_impl.1} parent=43 // pred_check_branch
          %1090 = sbr.rel (%p1088) target = $region92
        $region91: #{_seq_impl.1} parent=43 // pred_region
          %s1091 = smul.u32 4, %s30
          %p1092 = scmp.lt.s32.totalorder %s1091, 3
          %s1093 = scalar_select %p1092, %s1091, 3
          %s1094 = smul.addr %s1093, 8
          %s1095 = scalar_lea.vmem %s10, %s1094
        $region92: #{_seq_impl.1} parent=43 // pred_fallthru
          _
        // Predicated region
        $region93: #{_seq_impl.1} parent=43 // pred_check
          %p1096 = pneg %p338
        $region94: #{_seq_impl.1} parent=43 // pred_check_branch
          %1098 = sbr.rel (%p1096) target = $region96
        $region95: #{_seq_impl.1} parent=43 // pred_region
          %1100 = dma.done [#allocation3], 512
        $region96: #{_seq_impl.1} parent=43 // pred_fallthru
          _
        // Predicated region
        $region97: #{_seq_impl.1} parent=43 // pred_check
          %p1101 = pneg %p364
        $region98: #{_seq_impl.1} parent=43 // pred_check_branch
          %1103 = sbr.rel (%p1101) target = $region100
        $region99: #{_seq_impl.1} parent=43 // pred_region
          %1105 = dma.done [#allocation5], 512
        $region100: #{_seq_impl.1} parent=43 // pred_fallthru
          _
      $region44: #{_seq_impl.1} parent=5 // pred_fallthru
        _
      %p1106 = scmp.le.s32.totalorder 2, %s21
      // Predicated region
      $region101: #{_seq_impl.1} parent=5 // pred_check
        %p1107 = pneg %p1106
      $region102: #{_seq_impl.1} parent=5 // pred_check_branch
        %1109 = sbr.rel (%p1107) target = $region104
      $region103: #{_seq_impl.1} parent=5 // pred_region
        %s1110 = ssub.s32 %s21, 2
        // Predicated region
        $region105: #{_seq_impl.1} parent=103 // pred_check
          %p1111 = pneg %p212
        $region106: #{_seq_impl.1} parent=103 // pred_check_branch
          %1113 = sbr.rel (%p1111) target = $region108
        $region107: #{_seq_impl.1} parent=103 // pred_region
          %s1114 = smul.u32 4, %s32
          %p1115 = scmp.lt.s32.totalorder %s33, 3
          %s1116 = scalar_select %p1115, %s33, 3
          %p1117 = scmp.lt.s32.totalorder %s1114, 3
          %s1118 = scalar_select %p1117, %s1114, 3
          %s1119 = smul.addr %s1116, 4
          %s1120 = sadd.s32 %s1118, %s1119
          %s1121 = smul.addr %s1120, 8
          %s1122 = scalar_lea.vmem %s6, %s1121
        $region108: #{_seq_impl.1} parent=103 // pred_fallthru
          _
        // Predicated region
        $region109: #{_seq_impl.1} parent=103 // pred_check
          %p1123 = pneg %p240
        $region110: #{_seq_impl.1} parent=103 // pred_check_branch
          %1125 = sbr.rel (%p1123) target = $region112
        $region111: #{_seq_impl.1} parent=103 // pred_region
          %s1126 = smul.u32 4, %s32
          %p1127 = scmp.lt.s32.totalorder %s33, 3
          %s1128 = scalar_select %p1127, %s33, 3
          %p1129 = scmp.lt.s32.totalorder %s1126, 3
          %s1130 = scalar_select %p1129, %s1126, 3
          %s1131 = smul.addr %s1128, 4
          %s1132 = sadd.s32 %s1130, %s1131
          %s1133 = smul.addr %s1132, 8
          %s1134 = scalar_lea.vmem %s7, %s1133
        $region112: #{_seq_impl.1} parent=103 // pred_fallthru
          _
      $region104: #{_seq_impl.1} parent=5 // pred_fallthru
        _
    $region6: #{_seq_impl.1} parent=1 // loop_footer
      %s25 = sadd.s32 1, %s21
    $region7: #{_seq_impl.1} parent=1 // loop_footer_branch
      %20 = sbr.rel target = $region3
    $region8: #{_seq_impl.1} parent=1 // loop_exit
      _
    %1135 = vsyncpa [#allocation3], 1
    %s1136 = scalar_lea.sflag [#allocation3], 1
    %1137 = vsyncpa %s1136, 1
    %1138 = vsyncpa [#allocation5], 1

</llo_original>
